<compile_context>
chip_gen: v6e
topology: v6e:2x2x1
jax: 0.10.0
libtpu: 0.0.40
codegen_flags: <defaults>
</compile_context>

<pallas_src>
import math
import numpy as np
import jax
import jax.numpy as jnp
from jax import lax
from jax.experimental import pallas as pl
from jax.experimental.pallas import tpu as pltpu

HEAD_SIZE = 64
BIG = 1e12                                  # torch constant 1000000000000.0
INV_SQRT_HS = 1.0 / math.sqrt(HEAD_SIZE)    # 0.125 (exact power of two)
BIG_SCALED = BIG * INV_SQRT_HS              # masking constant after scale fold
Q_SCALE = 0.5 * INV_SQRT_HS                 # extra 0.5 compensates dup-halves dot


# ----------------------------- kernels ---------------------------------------

def _masked_logits(x_ref, mrow_ref, mcol_ref, tril_ref, w_ref, b_ref, cs_ref):
    """GlobalPointer math for one (Bblk, S, H) tile -> (Bblk, S, S) masked logits."""
    Bblk, S, H = x_ref.shape
    D2 = 2 * HEAD_SIZE

    # dense projection [q | rot(q) | k | rot(k)] in one MXU pass (bf16 in, f32 acc)
    x2 = x_ref[...].reshape(Bblk * S, H).astype(jnp.bfloat16)
    proj = jnp.dot(x2, w_ref[...], preferred_element_type=jnp.float32) + b_ref[...]

    # RoPE: [qw | rot(qw)] * [cos | sin]; duplicate-halves combine via XLU roll.
    cs = cs_ref[...]                          # (Bblk*S, 128) pre-tiled [cos|sin]
    qh = proj[:, :D2] * cs                    # 128-lane-aligned slices
    kh = proj[:, D2:] * cs
    q = (qh + pltpu.roll(qh, HEAD_SIZE, axis=1)) * Q_SCALE   # scale folded here
    k = kh + pltpu.roll(kh, HEAD_SIZE, axis=1)

    q3 = q.reshape(Bblk, S, D2).astype(jnp.bfloat16)
    k3 = k.reshape(Bblk, S, D2).astype(jnp.bfloat16)
    logits = lax.dot_general(q3, k3, (((2,), (2,)), ((0,), (0,))),
                             preferred_element_type=jnp.float32)   # (Bblk, S, S)

    # pad mask on both axes + hoisted lower-triangular mask (already * BIG_SCALED)
    pad2 = mrow_ref[...] * mcol_ref[...]      # (Bblk,S,1)*(Bblk,1,S) -> (Bblk,S,S)
    return logits * pad2 - (1.0 - pad2) * BIG_SCALED - tril_ref[...]


def _gp_logits_kernel(x_ref, mrow_ref, mcol_ref, tril_ref, w_ref, b_ref, cs_ref,
                      o_ref):
    o_ref[...] = _masked_logits(x_ref, mrow_ref, mcol_ref, tril_ref,
                                w_ref, b_ref, cs_ref)


def _gp_fused_kernel(x_ref, mrow_ref, mcol_ref, labels_ref, tril_ref, w_ref, b_ref,
                     cs_ref, o_ref, loss_ref):
    logits = _masked_logits(x_ref, mrow_ref, mcol_ref, tril_ref,
                            w_ref, b_ref, cs_ref)
    o_ref[...] = logits

    # multilabel categorical CE on the resident logits tile (no HBM round trip)
    y = labels_ref[...]                       # (Bblk, S, S)
    yp = (1.0 - 2.0 * y) * logits

    def lse_with_zero(v):
        # logsumexp over (S,S) plus an appended 0 entry (stable), per batch elem
        m = jnp.max(jnp.max(v, axis=2, keepdims=True), axis=1, keepdims=True)
        m = jnp.maximum(m, 0.0)
        s = jnp.sum(jnp.sum(jnp.exp(v - m), axis=2, keepdims=True),
                    axis=1, keepdims=True) + jnp.exp(-m)
        return m + jnp.log(s)                 # (Bblk, 1, 1)

    # neg branch reduced (and released) before the pos branch is formed
    neg_loss = lse_with_zero(yp - y * BIG)
    pos_loss = lse_with_zero(yp - (1.0 - y) * BIG)
    loss_ref[...] = jnp.broadcast_to(neg_loss + pos_loss, loss_ref.shape)


# ----------------------------- wrapper ----------------------------------------

def _specs(block_b, S, H, with_labels):
    data_specs = [
        pl.BlockSpec((block_b, S, H), lambda g: (g, 0, 0)),   # sequence_output
        pl.BlockSpec((block_b, S, 1), lambda g: (g, 0, 0)),   # mask (row layout)
        pl.BlockSpec((block_b, 1, S), lambda g: (g, 0, 0)),   # mask (col layout)
    ]
    if with_labels:
        data_specs.append(pl.BlockSpec((block_b, S, S), lambda g: (g, 0, 0)))
    const_specs = [                                           # resident constants
        pl.BlockSpec((S, S), lambda g: (0, 0)),               # tril * BIG_SCALED
        pl.BlockSpec((H, 4 * HEAD_SIZE), lambda g: (0, 0)),   # W_all (bf16)
        pl.BlockSpec((1, 4 * HEAD_SIZE), lambda g: (0, 0)),   # b_all (f32)
        pl.BlockSpec((block_b * S, 2 * HEAD_SIZE), lambda g: (0, 0)),  # [cos|sin]
    ]
    return data_specs + const_specs


def nbme_gp_forward(sequence_output, attention_mask, params, labels=None,
                    block_b=None):
    """Forward of NBMEGPModel after the transformer backbone.

    sequence_output: (B, S, H) f32 (= backbone last_hidden_state; dropout=identity)
    attention_mask : (B, S) {0,1}
    labels         : optional (B, 1, S, S)
    Returns (logits (B, 1, S, S), scalar loss).
    """
    B, S, H = sequence_output.shape
    if block_b is None:
        block_b = B if B <= 8 else 8
    assert B % block_b == 0, "batch must be divisible by the batch block"
    grid = (B // block_b,)

    w_all, b_all, cos_sin, tril_big = params
    mask = attention_mask.astype(jnp.float32)
    mrow = mask.reshape(B, S, 1)
    mcol = mask.reshape(B, 1, S)
    cs_tiled = jnp.tile(cos_sin, (block_b, 1))        # (block_b*S, 128)

    # TODO(synk): for production S (>1024) add an S_k grid axis so the (S,S)
    # logits output block double-buffers within v7x's 64 MiB VMEM.
    cparams = pltpu.CompilerParams(dimension_semantics=("parallel",))

    if labels is None:
        logits = pl.pallas_call(
            _gp_logits_kernel,
            out_shape=jax.ShapeDtypeStruct((B, S, S), jnp.float32),
            grid=grid,
            in_specs=_specs(block_b, S, H, with_labels=False),
            out_specs=pl.BlockSpec((block_b, S, S), lambda g: (g, 0, 0)),
            compiler_params=cparams,
        )(sequence_output, mrow, mcol, tril_big, w_all, b_all, cs_tiled)
        return logits.reshape(B, 1, S, S), jnp.float32(0.0)

    labels3 = labels.astype(jnp.float32).reshape(B, S, S)
    logits, loss_part = pl.pallas_call(
        _gp_fused_kernel,
        out_shape=(jax.ShapeDtypeStruct((B, S, S), jnp.float32),
                   jax.ShapeDtypeStruct((B, 1, 128), jnp.float32)),
        grid=grid,
        in_specs=_specs(block_b, S, H, with_labels=True),
        out_specs=(pl.BlockSpec((block_b, S, S), lambda g: (g, 0, 0)),
                   pl.BlockSpec((block_b, 1, 128), lambda g: (g, 0, 0))),
        compiler_params=cparams,
    )(sequence_output, mrow, mcol, labels3, tril_big, w_all, b_all, cs_tiled)

    # per-(batch,head) partial losses reduced outside the kernel (keeps the grid
    # parallel for megacore instead of a serial scalar accumulator)
    loss = jnp.mean(loss_part[:, 0, 0])
    return logits.reshape(B, 1, S, S), loss


# ----------------------------- parameters --------------------------------------

def _rot_cols(M):
    # out[..., 2i] = -M[..., 2i+1], out[..., 2i+1] = M[..., 2i]
    Me = M[..., 0::2]
    Mo = M[..., 1::2]
    return jnp.stack([-Mo, Me], axis=-1).reshape(M.shape)


def init_params(key, hidden_size, seq_len):
    kw_, kb_ = jax.random.split(key)
    lim = 1.0 / math.sqrt(hidden_size)                 # nn.Linear default init
    W = jax.random.uniform(kw_, (hidden_size, 2 * HEAD_SIZE), jnp.float32, -lim, lim)
    bvec = jax.random.uniform(kb_, (2 * HEAD_SIZE,), jnp.float32, -lim, lim)

    Wq, Wk = W[:, :HEAD_SIZE], W[:, HEAD_SIZE:]
    bq, bk = bvec[:HEAD_SIZE], bvec[HEAD_SIZE:]
    # column layout [q | rot(q) | k | rot(k)] keeps every in-kernel lane slice
    # 128-aligned (no vreg-straddling 64-wide slices at offsets 64/192)
    W_all = jnp.concatenate([Wq, _rot_cols(Wq), Wk, _rot_cols(Wk)], axis=1)
    b_all = jnp.concatenate([bq, _rot_cols(bq), bk, _rot_cols(bk)],
                            axis=0).reshape(1, 4 * HEAD_SIZE)

    # SinusoidalPositionEmbedding(head_size, 'zero') + repeat_interleave(2)
    half = HEAD_SIZE // 2
    freqs = 10000.0 ** (-2.0 * jnp.arange(half, dtype=jnp.float32) / HEAD_SIZE)
    ang = jnp.arange(seq_len, dtype=jnp.float32)[:, None] * freqs[None, :]
    cos_pos = jnp.repeat(jnp.cos(ang), 2, axis=-1)     # (S, 64)
    sin_pos = jnp.repeat(jnp.sin(ang), 2, axis=-1)
    cos_sin = jnp.concatenate([cos_pos, sin_pos], axis=-1)   # (S, 128)

    rows = jnp.arange(seq_len)[:, None]
    cols = jnp.arange(seq_len)[None, :]
    tril_big = (rows > cols).astype(jnp.float32) * BIG_SCALED  # hoisted tril mask

    params = (W_all.astype(jnp.bfloat16), b_all, cos_sin, tril_big)
    ref_params = (W, bvec, cos_pos, sin_pos)
    return params, ref_params


# ----------------------------- pure-JAX reference -------------------------------

def ref_forward(seq_out, mask2d, labels, W, bvec, cos_pos, sin_pos):
    B, S, H = seq_out.shape
    proj = seq_out @ W + bvec
    qw, kw = proj[..., :HEAD_SIZE], proj[..., HEAD_SIZE:]

    def rot(v):
        ve, vo = v[..., 0::2], v[..., 1::2]
        return jnp.stack([-vo, ve], -1).reshape(v.shape)

    q = qw * cos_pos + rot(qw) * sin_pos
    k = kw * cos_pos + rot(kw) * sin_pos
    logits = jnp.einsum('bmd,bnd->bmn', q, k)
    pad2 = mask2d[:, :, None] * mask2d[:, None, :]
    logits = logits * pad2 - (1 - pad2) * BIG
    tril = jnp.tril(jnp.ones((S, S), jnp.float32), -1)
    logits = (logits - tril * BIG)[:, None] / (HEAD_SIZE ** 0.5)

    bh = B * 1
    y_true = labels.reshape(bh, -1)
    y_pred = logits.reshape(bh, -1)
    yp = (1 - 2 * y_true) * y_pred
    z = jnp.zeros((bh, 1), jnp.float32)
    yp_neg = jnp.concatenate([yp - y_true * BIG, z], -1)
    yp_pos = jnp.concatenate([yp - (1 - y_true) * BIG, z], -1)
    loss = jnp.mean(jax.scipy.special.logsumexp(yp_neg, -1) +
                    jax.scipy.special.logsumexp(yp_pos, -1))
    return logits, loss


# ------------------------------------ main ---------------------------------------

if __name__ == "__main__":
    B, S, H = 2, 128, 128
    key = jax.random.PRNGKey(0)
    k1, k2, k3 = jax.random.split(key, 3)

    # stand-in for transformer.last_hidden_state (after dropout = identity)
    sequence_output = jax.random.normal(k1, (B, S, H), jnp.float32) * 0.5

    lengths = jnp.array([S, S - 32])
    mask2d = (jnp.arange(S)[None, :] < lengths[:, None]).astype(jnp.float32)  # (B, S)

    rows = jnp.arange(S)[:, None]
    cols = jnp.arange(S)[None, :]
    valid = (mask2d[:, :, None] * mask2d[:, None, :]) * (rows <= cols).astype(jnp.float32)
    labels = ((jax.random.uniform(k3, (B, S, S)) < 0.02).astype(jnp.float32)
              * valid)[:, None]                                               # (B,1,S,S)

    params, (W, bvec, cos_pos, sin_pos) = init_params(k2, H, S)

    # fused logits + loss path
    logits, loss = nbme_gp_forward(sequence_output, mask2d, params, labels=labels)
    logits = jax.block_until_ready(logits)
    loss = jax.block_until_ready(loss)

    # inference path (labels=None)
    logits_nl, loss0 = nbme_gp_forward(sequence_output, mask2d, params, labels=None)
    logits_nl = jax.block_until_ready(logits_nl)

    # sanity check vs. pure-JAX f32 reference (bf16 MXU inputs -> relaxed tol)
    ref_logits, ref_loss = ref_forward(sequence_output, mask2d, labels, W, bvec,
                                       cos_pos, sin_pos)
    np.testing.assert_allclose(np.asarray(logits), np.asarray(ref_logits),
                               rtol=1e-2, atol=5e-2)
    np.testing.assert_allclose(np.asarray(logits_nl), np.asarray(ref_logits),
                               rtol=1e-2, atol=5e-2)
    np.testing.assert_allclose(float(loss), float(ref_loss), rtol=1e-2, atol=1e-2)
    assert np.isfinite(float(loss))
    assert float(loss0) == 0.0

    print("KERNEL_OK")
</pallas_src>

<mosaic_0001>
module attributes {stable_mosaic.version = 11 : i64} {
  func.func @_gp_fused_kernel(%arg0: i32, %arg1: memref<2x128x128xf32, #tpu.memory_space<vmem>>, %arg2: memref<2x128x1xf32, #tpu.memory_space<vmem>>, %arg3: memref<2x1x128xf32, #tpu.memory_space<vmem>>, %arg4: memref<2x128x128xf32, #tpu.memory_space<vmem>>, %arg5: memref<128x128xf32, #tpu.memory_space<vmem>>, %arg6: memref<128x256xbf16, #tpu.memory_space<vmem>>, %arg7: memref<1x256xf32, #tpu.memory_space<vmem>>, %arg8: memref<256x128xf32, #tpu.memory_space<vmem>>, %arg9: memref<2x128x128xf32, #tpu.memory_space<vmem>>, %arg10: memref<2x1x128xf32, #tpu.memory_space<vmem>>) attributes {dimension_semantics = [#tpu.dimension_semantics<parallel>], iteration_bounds = array<i64: 1>, scalar_prefetch = 0 : i64, scratch_operands = 0 : i64, tpu.core_type = #tpu.core_type<tc>, window_params = [{transform_indices = @transform_0, window_bounds = array<i64: 2, 128, 128>}, {transform_indices = @transform_1, window_bounds = array<i64: 2, 128, 1>}, {transform_indices = @transform_2, window_bounds = array<i64: 2, 1, 128>}, {transform_indices = @transform_3, window_bounds = array<i64: 2, 128, 128>}, {pipeline_mode = #tpu.pipeline_mode<synchronous>, transform_indices = @transform_4, window_bounds = array<i64: 128, 128>}, {pipeline_mode = #tpu.pipeline_mode<synchronous>, transform_indices = @transform_5, window_bounds = array<i64: 128, 256>}, {pipeline_mode = #tpu.pipeline_mode<synchronous>, transform_indices = @transform_6, window_bounds = array<i64: 1, 256>}, {pipeline_mode = #tpu.pipeline_mode<synchronous>, transform_indices = @transform_7, window_bounds = array<i64: 256, 128>}, {transform_indices = @transform_8, window_bounds = array<i64: 2, 128, 128>}, {transform_indices = @transform_9, window_bounds = array<i64: 2, 1, 128>}]} {
    %c0 = arith.constant 0 : index
    %c0_0 = arith.constant 0 : index
    %c0_1 = arith.constant 0 : index
    %0 = vector.load %arg1[%c0, %c0_0, %c0_1] : memref<2x128x128xf32, #tpu.memory_space<vmem>>, vector<2x128x128xf32>
    %1 = vector.shape_cast %0 : vector<2x128x128xf32> to vector<256x128xf32>
    %2 = arith.truncf %1 : vector<256x128xf32> to vector<256x128xbf16>
    %c0_2 = arith.constant 0 : index
    %c0_3 = arith.constant 0 : index
    %3 = vector.load %arg6[%c0_2, %c0_3] : memref<128x256xbf16, #tpu.memory_space<vmem>>, vector<128x256xbf16>
    %cst = arith.constant dense<0.000000e+00> : vector<256x256xf32>
    %4 = tpu.matmul %2, %3, %cst {dimension_numbers = #tpu.dot_dimension_numbers<[1], [0], [0], [1], [0, 0, 1, 1], [], []>} : vector<256x128xbf16>, vector<128x256xbf16>, vector<256x256xf32> -> vector<256x256xf32>
    %c0_4 = arith.constant 0 : index
    %c0_5 = arith.constant 0 : index
    %5 = vector.load %arg7[%c0_4, %c0_5] : memref<1x256xf32, #tpu.memory_space<vmem>>, vector<1x256xf32>
    %6 = vector.broadcast %5 : vector<1x256xf32> to vector<256x256xf32>
    %7 = arith.addf %4, %6 : vector<256x256xf32>
    %c0_6 = arith.constant 0 : index
    %c0_7 = arith.constant 0 : index
    %8 = vector.load %arg8[%c0_6, %c0_7] : memref<256x128xf32, #tpu.memory_space<vmem>>, vector<256x128xf32>
    %9 = vector.extract_strided_slice %7 {offsets = [0, 0], sizes = [256, 128], strides = [1, 1]} : vector<256x256xf32> to vector<256x128xf32>
    %10 = arith.mulf %9, %8 : vector<256x128xf32>
    %11 = vector.extract_strided_slice %7 {offsets = [0, 128], sizes = [256, 128], strides = [1, 1]} : vector<256x256xf32> to vector<256x128xf32>
    %12 = arith.mulf %11, %8 : vector<256x128xf32>
    %c64_i32 = arith.constant 64 : i32
    %13 = tpu.dynamic_rotate %10 by %c64_i32 dim 1 : vector<256x128xf32>, i32 -> vector<256x128xf32>
    %14 = arith.addf %10, %13 : vector<256x128xf32>
    %cst_8 = arith.constant 6.250000e-02 : f32
    %15 = vector.broadcast %cst_8 : f32 to vector<256x128xf32>
    %16 = arith.mulf %14, %15 : vector<256x128xf32>
    %c64_i32_9 = arith.constant 64 : i32
    %17 = tpu.dynamic_rotate %12 by %c64_i32_9 dim 1 : vector<256x128xf32>, i32 -> vector<256x128xf32>
    %18 = arith.addf %12, %17 : vector<256x128xf32>
    %19 = vector.shape_cast %16 : vector<256x128xf32> to vector<2x128x128xf32>
    %20 = arith.truncf %19 : vector<2x128x128xf32> to vector<2x128x128xbf16>
    %21 = vector.shape_cast %18 : vector<256x128xf32> to vector<2x128x128xf32>
    %22 = arith.truncf %21 : vector<2x128x128xf32> to vector<2x128x128xbf16>
    %cst_10 = arith.constant dense<0.000000e+00> : vector<2x128x128xf32>
    %23 = tpu.matmul %20, %22, %cst_10 {dimension_numbers = #tpu.dot_dimension_numbers<[2], [2], [1], [1], [0, 0, 0, 1, 1, 1], [0], [0]>} : vector<2x128x128xbf16>, vector<2x128x128xbf16>, vector<2x128x128xf32> -> vector<2x128x128xf32>
    %c0_11 = arith.constant 0 : index
    %c0_12 = arith.constant 0 : index
    %c0_13 = arith.constant 0 : index
    %24 = vector.load %arg2[%c0_11, %c0_12, %c0_13] : memref<2x128x1xf32, #tpu.memory_space<vmem>>, vector<2x128x1xf32>
    %c0_14 = arith.constant 0 : index
    %c0_15 = arith.constant 0 : index
    %c0_16 = arith.constant 0 : index
    %25 = vector.load %arg3[%c0_14, %c0_15, %c0_16] : memref<2x1x128xf32, #tpu.memory_space<vmem>>, vector<2x1x128xf32>
    %26 = vector.broadcast %24 : vector<2x128x1xf32> to vector<2x128x128xf32>
    %27 = vector.broadcast %25 : vector<2x1x128xf32> to vector<2x128x128xf32>
    %28 = arith.mulf %26, %27 : vector<2x128x128xf32>
    %29 = arith.mulf %23, %28 : vector<2x128x128xf32>
    %cst_17 = arith.constant 1.000000e+00 : f32
    %30 = vector.broadcast %cst_17 : f32 to vector<2x128x128xf32>
    %31 = arith.subf %30, %28 : vector<2x128x128xf32>
    %cst_18 = arith.constant 1.250000e+11 : f32
    %32 = vector.broadcast %cst_18 : f32 to vector<2x128x128xf32>
    %33 = arith.mulf %31, %32 : vector<2x128x128xf32>
    %34 = arith.subf %29, %33 : vector<2x128x128xf32>
    %c0_19 = arith.constant 0 : index
    %c0_20 = arith.constant 0 : index
    %35 = vector.load %arg5[%c0_19, %c0_20] : memref<128x128xf32, #tpu.memory_space<vmem>>, vector<128x128xf32>
    %36 = vector.shape_cast %35 : vector<128x128xf32> to vector<1x128x128xf32>
    %37 = vector.broadcast %36 : vector<1x128x128xf32> to vector<2x128x128xf32>
    %38 = arith.subf %34, %37 : vector<2x128x128xf32>
    %c0_21 = arith.constant 0 : index
    %c0_22 = arith.constant 0 : index
    %c0_23 = arith.constant 0 : index
    %39 = vector.load %arg9[%c0_21, %c0_22, %c0_23] : memref<2x128x128xf32, #tpu.memory_space<vmem>>, vector<2x128x128xf32>
    tpu.vector_store %arg9[%c0_21, %c0_22, %c0_23], %38 {strides = array<i32>} : memref<2x128x128xf32, #tpu.memory_space<vmem>>, vector<2x128x128xf32>,
    %c0_24 = arith.constant 0 : index
    %c0_25 = arith.constant 0 : index
    %c0_26 = arith.constant 0 : index
    %40 = vector.load %arg4[%c0_24, %c0_25, %c0_26] : memref<2x128x128xf32, #tpu.memory_space<vmem>>, vector<2x128x128xf32>
    %cst_27 = arith.constant 2.000000e+00 : f32
    %41 = vector.broadcast %cst_27 : f32 to vector<2x128x128xf32>
    %42 = arith.mulf %41, %40 : vector<2x128x128xf32>
    %cst_28 = arith.constant 1.000000e+00 : f32
    %43 = vector.broadcast %cst_28 : f32 to vector<2x128x128xf32>
    %44 = arith.subf %43, %42 : vector<2x128x128xf32>
    %45 = arith.mulf %44, %38 : vector<2x128x128xf32>
    %cst_29 = arith.constant 9.99999995E+11 : f32
    %46 = vector.broadcast %cst_29 : f32 to vector<2x128x128xf32>
    %47 = arith.mulf %40, %46 : vector<2x128x128xf32>
    %48 = arith.subf %45, %47 : vector<2x128x128xf32>
    %cst_30 = arith.constant dense<0xFF800000> : vector<2x128xf32>
    %49 = vector.multi_reduction <maximumf>, %48, %cst_30 [2] : vector<2x128x128xf32> to vector<2x128xf32>
    %50 = vector.shape_cast %49 : vector<2x128xf32> to vector<2x128x1xf32>
    %cst_31 = arith.constant dense<0xFF800000> : vector<2x1xf32>
    %51 = vector.multi_reduction <maximumf>, %50, %cst_31 [1] : vector<2x128x1xf32> to vector<2x1xf32>
    %52 = vector.shape_cast %51 : vector<2x1xf32> to vector<2x1x1xf32>
    %cst_32 = arith.constant 0.000000e+00 : f32
    %53 = vector.broadcast %cst_32 : f32 to vector<2x1x1xf32>
    %54 = arith.maximumf %52, %53 : vector<2x1x1xf32>
    %55 = vector.broadcast %54 : vector<2x1x1xf32> to vector<2x128x128xf32>
    %56 = arith.subf %48, %55 : vector<2x128x128xf32>
    %57 = math.exp %56 : vector<2x128x128xf32>
    %cst_33 = arith.constant dense<0.000000e+00> : vector<2x128xf32>
    %58 = vector.multi_reduction <add>, %57, %cst_33 [2] : vector<2x128x128xf32> to vector<2x128xf32>
    %59 = vector.shape_cast %58 : vector<2x128xf32> to vector<2x128x1xf32>
    %cst_34 = arith.constant dense<0.000000e+00> : vector<2x1xf32>
    %60 = vector.multi_reduction <add>, %59, %cst_34 [1] : vector<2x128x1xf32> to vector<2x1xf32>
    %61 = vector.shape_cast %60 : vector<2x1xf32> to vector<2x1x1xf32>
    %cst_35 = arith.constant 0.000000e+00 : f32
    %62 = vector.broadcast %cst_35 : f32 to vector<2x1x1xf32>
    %63 = arith.subf %62, %54 : vector<2x1x1xf32>
    %64 = math.exp %63 : vector<2x1x1xf32>
    %65 = arith.addf %61, %64 : vector<2x1x1xf32>
    %66 = math.log %65 : vector<2x1x1xf32>
    %67 = arith.addf %54, %66 : vector<2x1x1xf32>
    %cst_36 = arith.constant 1.000000e+00 : f32
    %68 = vector.broadcast %cst_36 : f32 to vector<2x128x128xf32>
    %69 = arith.subf %68, %40 : vector<2x128x128xf32>
    %cst_37 = arith.constant 9.99999995E+11 : f32
    %70 = vector.broadcast %cst_37 : f32 to vector<2x128x128xf32>
    %71 = arith.mulf %69, %70 : vector<2x128x128xf32>
    %72 = arith.subf %45, %71 : vector<2x128x128xf32>
    %cst_38 = arith.constant dense<0xFF800000> : vector<2x128xf32>
    %73 = vector.multi_reduction <maximumf>, %72, %cst_38 [2] : vector<2x128x128xf32> to vector<2x128xf32>
    %74 = vector.shape_cast %73 : vector<2x128xf32> to vector<2x128x1xf32>
    %cst_39 = arith.constant dense<0xFF800000> : vector<2x1xf32>
    %75 = vector.multi_reduction <maximumf>, %74, %cst_39 [1] : vector<2x128x1xf32> to vector<2x1xf32>
    %76 = vector.shape_cast %75 : vector<2x1xf32> to vector<2x1x1xf32>
    %cst_40 = arith.constant 0.000000e+00 : f32
    %77 = vector.broadcast %cst_40 : f32 to vector<2x1x1xf32>
    %78 = arith.maximumf %76, %77 : vector<2x1x1xf32>
    %79 = vector.broadcast %78 : vector<2x1x1xf32> to vector<2x128x128xf32>
    %80 = arith.subf %72, %79 : vector<2x128x128xf32>
    %81 = math.exp %80 : vector<2x128x128xf32>
    %cst_41 = arith.constant dense<0.000000e+00> : vector<2x128xf32>
    %82 = vector.multi_reduction <add>, %81, %cst_41 [2] : vector<2x128x128xf32> to vector<2x128xf32>
    %83 = vector.shape_cast %82 : vector<2x128xf32> to vector<2x128x1xf32>
    %cst_42 = arith.constant dense<0.000000e+00> : vector<2x1xf32>
    %84 = vector.multi_reduction <add>, %83, %cst_42 [1] : vector<2x128x1xf32> to vector<2x1xf32>
    %85 = vector.shape_cast %84 : vector<2x1xf32> to vector<2x1x1xf32>
    %cst_43 = arith.constant 0.000000e+00 : f32
    %86 = vector.broadcast %cst_43 : f32 to vector<2x1x1xf32>
    %87 = arith.subf %86, %78 : vector<2x1x1xf32>
    %88 = math.exp %87 : vector<2x1x1xf32>
    %89 = arith.addf %85, %88 : vector<2x1x1xf32>
    %90 = math.log %89 : vector<2x1x1xf32>
    %91 = arith.addf %78, %90 : vector<2x1x1xf32>
    %92 = arith.addf %67, %91 : vector<2x1x1xf32>
    %93 = vector.shape_cast %92 : vector<2x1x1xf32> to vector<2x1x1xf32>
    %94 = vector.broadcast %93 : vector<2x1x1xf32> to vector<2x1x128xf32>
    %c0_44 = arith.constant 0 : index
    %c0_45 = arith.constant 0 : index
    %c0_46 = arith.constant 0 : index
    %95 = vector.load %arg10[%c0_44, %c0_45, %c0_46] : memref<2x1x128xf32, #tpu.memory_space<vmem>>, vector<2x1x128xf32>
    tpu.vector_store %arg10[%c0_44, %c0_45, %c0_46], %94 {strides = array<i32>} : memref<2x1x128xf32, #tpu.memory_space<vmem>>, vector<2x1x128xf32>,
    return
  }
  func.func @transform_0(%arg0: i32) -> (i32, i32, i32) {
    %c0_i32 = arith.constant 0 : i32
    %c0_i32_0 = arith.constant 0 : i32
    %c0_i32_1 = arith.constant 0 : i32
    return %arg0, %c0_i32, %c0_i32_0 : i32, i32, i32
  }
  func.func @transform_1(%arg0: i32) -> (i32, i32, i32) {
    %c0_i32 = arith.constant 0 : i32
    %c0_i32_0 = arith.constant 0 : i32
    %c0_i32_1 = arith.constant 0 : i32
    return %arg0, %c0_i32, %c0_i32_0 : i32, i32, i32
  }
  func.func @transform_2(%arg0: i32) -> (i32, i32, i32) {
    %c0_i32 = arith.constant 0 : i32
    %c0_i32_0 = arith.constant 0 : i32
    %c0_i32_1 = arith.constant 0 : i32
    return %arg0, %c0_i32, %c0_i32_0 : i32, i32, i32
  }
  func.func @transform_3(%arg0: i32) -> (i32, i32, i32) {
    %c0_i32 = arith.constant 0 : i32
    %c0_i32_0 = arith.constant 0 : i32
    %c0_i32_1 = arith.constant 0 : i32
    return %arg0, %c0_i32, %c0_i32_0 : i32, i32, i32
  }
  func.func @transform_4(%arg0: i32) -> (i32, i32) {
    %c0_i32 = arith.constant 0 : i32
    %c0_i32_0 = arith.constant 0 : i32
    %c0_i32_1 = arith.constant 0 : i32
    return %c0_i32, %c0_i32_0 : i32, i32
  }
  func.func @transform_5(%arg0: i32) -> (i32, i32) {
    %c0_i32 = arith.constant 0 : i32
    %c0_i32_0 = arith.constant 0 : i32
    %c0_i32_1 = arith.constant 0 : i32
    return %c0_i32, %c0_i32_0 : i32, i32
  }
  func.func @transform_6(%arg0: i32) -> (i32, i32) {
    %c0_i32 = arith.constant 0 : i32
    %c0_i32_0 = arith.constant 0 : i32
    %c0_i32_1 = arith.constant 0 : i32
    return %c0_i32, %c0_i32_0 : i32, i32
  }
  func.func @transform_7(%arg0: i32) -> (i32, i32) {
    %c0_i32 = arith.constant 0 : i32
    %c0_i32_0 = arith.constant 0 : i32
    %c0_i32_1 = arith.constant 0 : i32
    return %c0_i32, %c0_i32_0 : i32, i32
  }
  func.func @transform_8(%arg0: i32) -> (i32, i32, i32) {
    %c0_i32 = arith.constant 0 : i32
    %c0_i32_0 = arith.constant 0 : i32
    %c0_i32_1 = arith.constant 0 : i32
    return %arg0, %c0_i32, %c0_i32_0 : i32, i32, i32
  }
  func.func @transform_9(%arg0: i32) -> (i32, i32, i32) {
    %c0_i32 = arith.constant 0 : i32
    %c0_i32_0 = arith.constant 0 : i32
    %c0_i32_1 = arith.constant 0 : i32
    return %arg0, %c0_i32, %c0_i32_0 : i32, i32, i32
  }
}

</mosaic_0001>

<llo_original>
// kernel: tpu_custom_call.1
$region0: #{tpu_custom_call.1}
  #allocation0 [shape = 'u32[]', space=smem, size = 0x4, offset = 0x4, fixed_abs, tag = 'smem constant byte address 0x4 - core index']
  #allocation1 [shape = 'u32[144,128]{1,0:T(1,128)}', space=vmem, size = 0x12000, scoped, tag = 'internal scratch']
  %s0 = inlined_call_operand.vmem [shape: f32[2,128,128], index: 0, kind: input, shape index: {}]
  %s1 = inlined_call_operand.vmem [shape: f32[2,128,1], index: 1, kind: input, shape index: {}]
  %s2 = inlined_call_operand.vmem [shape: f32[2,1,128], index: 2, kind: input, shape index: {}]
  %s3 = inlined_call_operand.hbm [shape: f32[2,128,128], index: 3, kind: input, shape index: {}]
  %s4 = inlined_call_operand.hbm [shape: f32[128,128], index: 4, kind: input, shape index: {}]
  %s5 = inlined_call_operand.hbm [shape: bf16[128,256], index: 5, kind: input, shape index: {}]
  %s6 = inlined_call_operand.vmem [shape: f32[1,256], index: 6, kind: input, shape index: {}]
  %s7 = inlined_call_operand.hbm [shape: f32[256,128], index: 7, kind: input, shape index: {}]
  %s8 = inlined_call_operand.hbm [shape: f32[2,128,128], index: 8, kind: output, shape index: {0}]
  %s9 = inlined_call_operand.hbm [shape: f32[2,1,128], index: 9, kind: output, shape index: {1}]
  %10 = xla_tuple %s8, %s9
  %s11 = sld [smem:[#allocation0]]
  $region66: #{tpu_custom_call.1} parent=0
    _
  %s13 = ssub.s32 1, %s11
  %s14 = scalar_select 0, %s13, %s11
  $region1: #{tpu_custom_call.1} parent=0
    #allocation2 [shape = 'u8[131072]{0}', space=vmem, size = 0x20000, scoped, tag = 'input window, operand 3, single buffered']
    #allocation3 [shape = 's32[1]{0}', space=sflag, size = 0x4, scoped, tag = 'scoped memory for tpu_custom_call.1']
    #allocation4 [shape = 's32[1]{0}', space=sflag, size = 0x4, scoped, tag = 'scoped memory for tpu_custom_call.1']
    #allocation5 [shape = 'u8[65536]{0}', space=vmem, size = 0x10000, scoped, tag = 'input window, operand 4, single buffered']
    #allocation6 [shape = 's32[1]{0}', space=sflag, size = 0x4, scoped, tag = 'scoped memory for tpu_custom_call.1']
    #allocation7 [shape = 'u8[65536]{0}', space=vmem, size = 0x10000, scoped, tag = 'input window, operand 5, single buffered']
    #allocation8 [shape = 'u8[131072]{0}', space=vmem, size = 0x20000, scoped, tag = 'input window, operand 7, single buffered']
    #allocation9 [shape = 's32[1]{0}', space=sflag, size = 0x4, scoped, tag = 'scoped memory for tpu_custom_call.1']
    #allocation10 [shape = 'u8[131072]{0}', space=vmem, size = 0x20000, scoped, tag = 'output window, operand 0, single buffered']
    #allocation11 [shape = 'u8[1024]{0}', space=vmem, size = 0x400, scoped, tag = 'output window, operand 1, single buffered']
    #allocation12 [shape = 's32[1]{0}', space=sflag, size = 0x4, scoped, tag = 'scoped memory for tpu_custom_call.1']
    %15 = vsyncpa [#allocation3], 0
    %16 = vsyncpa [#allocation6], 0
    %17 = vsyncpa [#allocation9], 0
    %18 = vsyncpa [#allocation4], 0
    %19 = vsyncpa [#allocation12], 0
    // Predicated region
    $region2: #{tpu_custom_call.1} parent=1 // pred_check
      _
    $region3: #{tpu_custom_call.1} parent=1 // pred_check_branch
      %21 = sbr.rel (0) target = $region5
    $region4: #{tpu_custom_call.1} parent=1 // pred_region
      _
    $region5: #{tpu_custom_call.1} parent=1 // pred_fallthru
      _
    // Predicated region
    $region6: #{tpu_custom_call.1} parent=1 // pred_check
      _
    $region7: #{tpu_custom_call.1} parent=1 // pred_check_branch
      %23 = sbr.rel (0) target = $region9
    $region8: #{tpu_custom_call.1} parent=1 // pred_region
      _
    $region9: #{tpu_custom_call.1} parent=1 // pred_fallthru
      _
    // Predicated region
    $region10: #{tpu_custom_call.1} parent=1 // pred_check
      _
    $region11: #{tpu_custom_call.1} parent=1 // pred_check_branch
      %25 = sbr.rel (0) target = $region13
    $region12: #{tpu_custom_call.1} parent=1 // pred_region
      _
    $region13: #{tpu_custom_call.1} parent=1 // pred_fallthru
      _
    // Predicated region
    $region14: #{tpu_custom_call.1} parent=1 // pred_check
      _
    $region15: #{tpu_custom_call.1} parent=1 // pred_check_branch
      %27 = sbr.rel (0) target = $region17
    $region16: #{tpu_custom_call.1} parent=1 // pred_region
      %s29 = ssub.s32 4096, 4096
      %30 = vsyncadd [#allocation3], %s29
      %s31 = sshll.u32 [#allocation2], 4
      %s32 = int_to_ptr.vmem [resolvable:$true] %s31
      %37 = dma.hbm_to_vmem [thread:$0]  %s3, 4096, %s32, [#allocation3], 128, 128, 8
    $region17: #{tpu_custom_call.1} parent=1 // pred_fallthru
      _
    // Predicated region
    $region18: #{tpu_custom_call.1} parent=1 // pred_check
      _
    $region19: #{tpu_custom_call.1} parent=1 // pred_check_branch
      %39 = sbr.rel (0) target = $region21
    $region20: #{tpu_custom_call.1} parent=1 // pred_region
      %s41 = ssub.s32 2048, 2048
      %42 = vsyncadd [#allocation6], %s41
      %s43 = sshll.u32 [#allocation5], 4
      %s44 = int_to_ptr.vmem [resolvable:$true] %s43
      %49 = dma.hbm_to_vmem [thread:$0]  %s4, 2048, %s44, [#allocation6], 128, 128, 8
    $region21: #{tpu_custom_call.1} parent=1 // pred_fallthru
      _
    // Predicated region
    $region22: #{tpu_custom_call.1} parent=1 // pred_check
      _
    $region23: #{tpu_custom_call.1} parent=1 // pred_check_branch
      %51 = sbr.rel (0) target = $region25
    $region24: #{tpu_custom_call.1} parent=1 // pred_region
      %s53 = ssub.s32 2048, 2048
      %54 = vsyncadd [#allocation6], %s53
      %s55 = sshll.u32 [#allocation7], 4
      %s56 = int_to_ptr.vmem [resolvable:$true] %s55
      %61 = dma.hbm_to_vmem [thread:$0]  %s5, 2048, %s56, [#allocation6], 128, 128, 8
    $region25: #{tpu_custom_call.1} parent=1 // pred_fallthru
      _
    // Predicated region
    $region26: #{tpu_custom_call.1} parent=1 // pred_check
      _
    $region27: #{tpu_custom_call.1} parent=1 // pred_check_branch
      %63 = sbr.rel (0) target = $region29
    $region28: #{tpu_custom_call.1} parent=1 // pred_region
      _
    $region29: #{tpu_custom_call.1} parent=1 // pred_fallthru
      _
    // Predicated region
    $region30: #{tpu_custom_call.1} parent=1 // pred_check
      _
    $region31: #{tpu_custom_call.1} parent=1 // pred_check_branch
      %65 = sbr.rel (0) target = $region33
    $region32: #{tpu_custom_call.1} parent=1 // pred_region
      %s67 = ssub.s32 4096, 4096
      %68 = vsyncadd [#allocation9], %s67
      %s69 = sshll.u32 [#allocation8], 4
      %s70 = int_to_ptr.vmem [resolvable:$true] %s69
      %75 = dma.hbm_to_vmem [thread:$0]  %s7, 4096, %s70, [#allocation9], 128, 128, 8
    $region33: #{tpu_custom_call.1} parent=1 // pred_fallthru
      _
    // Predicated region
    $region34: #{tpu_custom_call.1} parent=1 // pred_check
      _
    $region35: #{tpu_custom_call.1} parent=1 // pred_check_branch
      %77 = sbr.rel (0) target = $region37
    $region36: #{tpu_custom_call.1} parent=1 // pred_region
      %78 = dma.done [#allocation3], 4096
    $region37: #{tpu_custom_call.1} parent=1 // pred_fallthru
      _
    // Predicated region
    $region38: #{tpu_custom_call.1} parent=1 // pred_check
      _
    $region39: #{tpu_custom_call.1} parent=1 // pred_check_branch
      %80 = sbr.rel (0) target = $region41
    $region40: #{tpu_custom_call.1} parent=1 // pred_region
      %81 = dma.done [#allocation6], 2048
    $region41: #{tpu_custom_call.1} parent=1 // pred_fallthru
      _
    // Predicated region
    $region42: #{tpu_custom_call.1} parent=1 // pred_check
      _
    $region43: #{tpu_custom_call.1} parent=1 // pred_check_branch
      %83 = sbr.rel (0) target = $region45
    $region44: #{tpu_custom_call.1} parent=1 // pred_region
      %84 = dma.done [#allocation6], 2048
    $region45: #{tpu_custom_call.1} parent=1 // pred_fallthru
      _
    // Predicated region
    $region46: #{tpu_custom_call.1} parent=1 // pred_check
      _
    $region47: #{tpu_custom_call.1} parent=1 // pred_check_branch
      %86 = sbr.rel (0) target = $region49
    $region48: #{tpu_custom_call.1} parent=1 // pred_region
      %87 = dma.done [#allocation9], 4096
    $region49: #{tpu_custom_call.1} parent=1 // pred_fallthru
      _
    %v89 = vld [vmem:[%s0] sm:$0xff]
    %v90 = vld [vmem:[%s0 + $0x8] sm:$0xff]
    %v91 = vld [vmem:[%s0 + $0x10] sm:$0xff]
    %v92 = vld [vmem:[%s0 + $0x18] sm:$0xff]
    %v93 = vld [vmem:[%s0 + $0x20] sm:$0xff]
    %v94 = vld [vmem:[%s0 + $0x28] sm:$0xff]
    %v95 = vld [vmem:[%s0 + $0x30] sm:$0xff]
    %v96 = vld [vmem:[%s0 + $0x38] sm:$0xff]
    %v97 = vld [vmem:[%s0 + $0x40] sm:$0xff]
    %v98 = vld [vmem:[%s0 + $0x48] sm:$0xff]
    %v99 = vld [vmem:[%s0 + $0x50] sm:$0xff]
    %v100 = vld [vmem:[%s0 + $0x58] sm:$0xff]
    %v101 = vld [vmem:[%s0 + $0x60] sm:$0xff]
    %v102 = vld [vmem:[%s0 + $0x68] sm:$0xff]
    %v103 = vld [vmem:[%s0 + $0x70] sm:$0xff]
    %v104 = vld [vmem:[%s0 + $0x78] sm:$0xff]
    %v105 = vld [vmem:[%s0 + $0x80] sm:$0xff]
    %v106 = vld [vmem:[%s0 + $0x88] sm:$0xff]
    %v107 = vld [vmem:[%s0 + $0x90] sm:$0xff]
    %v108 = vld [vmem:[%s0 + $0x98] sm:$0xff]
    %v109 = vld [vmem:[%s0 + $0xa0] sm:$0xff]
    %v110 = vld [vmem:[%s0 + $0xa8] sm:$0xff]
    %v111 = vld [vmem:[%s0 + $0xb0] sm:$0xff]
    %v112 = vld [vmem:[%s0 + $0xb8] sm:$0xff]
    %v113 = vld [vmem:[%s0 + $0xc0] sm:$0xff]
    %v114 = vld [vmem:[%s0 + $0xc8] sm:$0xff]
    %v115 = vld [vmem:[%s0 + $0xd0] sm:$0xff]
    %v116 = vld [vmem:[%s0 + $0xd8] sm:$0xff]
    %v117 = vld [vmem:[%s0 + $0xe0] sm:$0xff]
    %v118 = vld [vmem:[%s0 + $0xe8] sm:$0xff]
    %v119 = vld [vmem:[%s0 + $0xf0] sm:$0xff]
    %v120 = vld [vmem:[%s0 + $0xf8] sm:$0xff]
    %v121 = vpack.c.bf16 %v90, %v89
    %v122 = vpack.c.bf16 %v92, %v91
    %v123 = vpack.c.bf16 %v94, %v93
    %v124 = vpack.c.bf16 %v96, %v95
    %v125 = vpack.c.bf16 %v98, %v97
    %v126 = vpack.c.bf16 %v100, %v99
    %v127 = vpack.c.bf16 %v102, %v101
    %v128 = vpack.c.bf16 %v104, %v103
    %v129 = vpack.c.bf16 %v106, %v105
    %v130 = vpack.c.bf16 %v108, %v107
    %v131 = vpack.c.bf16 %v110, %v109
    %v132 = vpack.c.bf16 %v112, %v111
    %v133 = vpack.c.bf16 %v114, %v113
    %v134 = vpack.c.bf16 %v116, %v115
    %v135 = vpack.c.bf16 %v118, %v117
    %v136 = vpack.c.bf16 %v120, %v119
    %v137 = vld [vmem:[#allocation7] sm:$0xff]
    %v138 = vld [vmem:[#allocation7 + $0x8] sm:$0xff]
    %v139 = vld [vmem:[#allocation7 + $0x10] sm:$0xff]
    %v140 = vld [vmem:[#allocation7 + $0x18] sm:$0xff]
    %v141 = vld [vmem:[#allocation7 + $0x20] sm:$0xff]
    %v142 = vld [vmem:[#allocation7 + $0x28] sm:$0xff]
    %v143 = vld [vmem:[#allocation7 + $0x30] sm:$0xff]
    %v144 = vld [vmem:[#allocation7 + $0x38] sm:$0xff]
    %v145 = vld [vmem:[#allocation7 + $0x40] sm:$0xff]
    %v146 = vld [vmem:[#allocation7 + $0x48] sm:$0xff]
    %v147 = vld [vmem:[#allocation7 + $0x50] sm:$0xff]
    %v148 = vld [vmem:[#allocation7 + $0x58] sm:$0xff]
    %v149 = vld [vmem:[#allocation7 + $0x60] sm:$0xff]
    %v150 = vld [vmem:[#allocation7 + $0x68] sm:$0xff]
    %v151 = vld [vmem:[#allocation7 + $0x70] sm:$0xff]
    %v152 = vld [vmem:[#allocation7 + $0x78] sm:$0xff]
    %v153 = vld [vmem:[%s6] sm:$0x3]
    %v155 = vlaneseq
    %v156 = vshrl.u32 %v155, 7
    %v157 = vsub.s32 0, %v156
    %v158 = vrot.slane %v153, %v157
    %v159 = vlaneseq
    %v160 = vshrl.u32 %v159, 7
    %v161 = vsub.s32 1, %v160
    %v162 = vrot.slane %v153, %v161
    %v181 = vunpack.c.l.b16 %v137
    %v182 = vunpack.c.h.b16 %v137
    %v183 = vunpack.c.l.b16 %v138
    %v184 = vunpack.c.h.b16 %v138
    %v185 = vunpack.c.l.b16 %v139
    %v186 = vunpack.c.h.b16 %v139
    %v187 = vunpack.c.l.b16 %v140
    %v188 = vunpack.c.h.b16 %v140
    %v189 = vunpack.c.l.b16 %v141
    %v190 = vunpack.c.h.b16 %v141
    %v191 = vunpack.c.l.b16 %v142
    %v192 = vunpack.c.h.b16 %v142
    %v193 = vunpack.c.l.b16 %v143
    %v194 = vunpack.c.h.b16 %v143
    %v195 = vunpack.c.l.b16 %v144
    %v196 = vunpack.c.h.b16 %v144
    %v197 = vunpack.c.l.b16 %v145
    %v198 = vunpack.c.h.b16 %v145
    %v199 = vunpack.c.l.b16 %v146
    %v200 = vunpack.c.h.b16 %v146
    %v201 = vunpack.c.l.b16 %v147
    %v202 = vunpack.c.h.b16 %v147
    %v203 = vunpack.c.l.b16 %v148
    %v204 = vunpack.c.h.b16 %v148
    %v205 = vunpack.c.l.b16 %v149
    %v206 = vunpack.c.h.b16 %v149
    %v207 = vunpack.c.l.b16 %v150
    %v208 = vunpack.c.h.b16 %v150
    %v209 = vunpack.c.l.b16 %v151
    %v210 = vunpack.c.h.b16 %v151
    %v211 = vunpack.c.l.b16 %v152
    %v212 = vunpack.c.h.b16 %v152
    %v213 = vpack.c.b16 %v183, %v181
    %v214 = vpack.c.b16 %v184, %v182
    %v215 = vpack.c.b16 %v187, %v185
    %v216 = vpack.c.b16 %v188, %v186
    %v217 = vpack.c.b16 %v191, %v189
    %v218 = vpack.c.b16 %v192, %v190
    %v219 = vpack.c.b16 %v195, %v193
    %v220 = vpack.c.b16 %v196, %v194
    %v221 = vpack.c.b16 %v199, %v197
    %v222 = vpack.c.b16 %v200, %v198
    %v223 = vpack.c.b16 %v203, %v201
    %v224 = vpack.c.b16 %v204, %v202
    %v225 = vpack.c.b16 %v207, %v205
    %v226 = vpack.c.b16 %v208, %v206
    %v227 = vpack.c.b16 %v211, %v209
    %v228 = vpack.c.b16 %v212, %v210
    %245 = vmatprep.subr.bf16.mxu0 %v228
    %246 = vmatpush1.bf16.msra.mxu0 %v227
    %247 = vmatprep.subr.bf16.mxu0 %v226
    %248 = vmatpush1.bf16.msra.mxu0 %v225
    %249 = vmatprep.subr.bf16.mxu0 %v224
    %250 = vmatpush1.bf16.msra.mxu0 %v223
    %251 = vmatprep.subr.bf16.mxu0 %v222
    %252 = vmatpush1.bf16.msra.mxu0 %v221
    %253 = vmatprep.subr.bf16.mxu0 %v220
    %254 = vmatpush1.bf16.msra.mxu0 %v219
    %255 = vmatprep.subr.bf16.mxu0 %v218
    %256 = vmatpush1.bf16.msra.mxu0 %v217
    %257 = vmatprep.subr.bf16.mxu0 %v216
    %258 = vmatpush1.bf16.msra.mxu0 %v215
    %259 = vmatprep.subr.bf16.mxu0 %v214
    %260 = vmatpush1.bf16.msra.mxu0 %v213
    %261 = vmatprep.subr.bf16.mxu0 0
    %262 = vmatpush2.bf16.msra.mxu0 0
    %263 = vmatprep.subr.bf16.mxu0 0
    %264 = vmatpush2.bf16.msra.mxu0 0
    %265 = vmatprep.subr.bf16.mxu0 0
    %266 = vmatpush2.bf16.msra.mxu0 0
    %267 = vmatprep.subr.bf16.mxu0 0
    %268 = vmatpush2.bf16.msra.mxu0 0
    %269 = vmatprep.subr.bf16.mxu0 0
    %270 = vmatpush2.bf16.msra.mxu0 0
    %271 = vmatprep.subr.bf16.mxu0 0
    %272 = vmatpush2.bf16.msra.mxu0 0
    %273 = vmatprep.subr.bf16.mxu0 0
    %274 = vmatpush2.bf16.msra.mxu0 0
    %275 = vmatprep.subr.bf16.mxu0 0
    %276 = vmatpush2.bf16.msra.mxu0 0
    %277 = vmatprep.mubr.bf16.mxu0 0
    %278 = vmatmul.mubr.bf16.gmra.mxu0 %v121
    %v279 = vpop.f32.mrf.mxu0
    %v280 = vadd.f32 %v158, %v279
    %v281 = vpop.f32.mrf.mxu0
    %v282 = vadd.f32 %v162, %v281
    %v283 = vpop.f32.mrf.mxu0
    %v284 = vadd.f32 %v158, %v283
    %v285 = vpop.f32.mrf.mxu0
    %v286 = vadd.f32 %v162, %v285
    %287 = vmatprep.mubr.bf16.mxu0 0
    %288 = vmatmul.mubr.bf16.gmra.mxu0 %v122
    %v289 = vpop.f32.mrf.mxu0
    %v290 = vadd.f32 %v158, %v289
    %v291 = vpop.f32.mrf.mxu0
    %v292 = vadd.f32 %v162, %v291
    %v293 = vpop.f32.mrf.mxu0
    %v294 = vadd.f32 %v158, %v293
    %v295 = vpop.f32.mrf.mxu0
    %v296 = vadd.f32 %v162, %v295
    %297 = vmatprep.mubr.bf16.mxu0 0
    %298 = vmatmul.mubr.bf16.gmra.mxu0 %v123
    %v299 = vpop.f32.mrf.mxu0
    %v300 = vadd.f32 %v158, %v299
    %v301 = vpop.f32.mrf.mxu0
    %v302 = vadd.f32 %v162, %v301
    %v303 = vpop.f32.mrf.mxu0
    %v304 = vadd.f32 %v158, %v303
    %v305 = vpop.f32.mrf.mxu0
    %v306 = vadd.f32 %v162, %v305
    %307 = vmatprep.mubr.bf16.mxu0 0
    %308 = vmatmul.mubr.bf16.gmra.mxu0 %v124
    %v309 = vpop.f32.mrf.mxu0
    %v310 = vadd.f32 %v158, %v309
    %v311 = vpop.f32.mrf.mxu0
    %v312 = vadd.f32 %v162, %v311
    %v313 = vpop.f32.mrf.mxu0
    %v314 = vadd.f32 %v158, %v313
    %v315 = vpop.f32.mrf.mxu0
    %v316 = vadd.f32 %v162, %v315
    %317 = vmatprep.mubr.bf16.mxu0 0
    %318 = vmatmul.mubr.bf16.gmra.mxu0 %v125
    %v319 = vpop.f32.mrf.mxu0
    %v320 = vadd.f32 %v158, %v319
    %v321 = vpop.f32.mrf.mxu0
    %v322 = vadd.f32 %v162, %v321
    %v323 = vpop.f32.mrf.mxu0
    %v324 = vadd.f32 %v158, %v323
    %v325 = vpop.f32.mrf.mxu0
    %v326 = vadd.f32 %v162, %v325
    %327 = vmatprep.mubr.bf16.mxu0 0
    %328 = vmatmul.mubr.bf16.gmra.mxu0 %v126
    %v329 = vpop.f32.mrf.mxu0
    %v330 = vadd.f32 %v158, %v329
    %v331 = vpop.f32.mrf.mxu0
    %v332 = vadd.f32 %v162, %v331
    %v333 = vpop.f32.mrf.mxu0
    %v334 = vadd.f32 %v158, %v333
    %v335 = vpop.f32.mrf.mxu0
    %v336 = vadd.f32 %v162, %v335
    %337 = vmatprep.mubr.bf16.mxu0 0
    %338 = vmatmul.mubr.bf16.gmra.mxu0 %v127
    %v339 = vpop.f32.mrf.mxu0
    %v340 = vadd.f32 %v158, %v339
    %v341 = vpop.f32.mrf.mxu0
    %v342 = vadd.f32 %v162, %v341
    %v343 = vpop.f32.mrf.mxu0
    %v344 = vadd.f32 %v158, %v343
    %v345 = vpop.f32.mrf.mxu0
    %v346 = vadd.f32 %v162, %v345
    %347 = vmatprep.mubr.bf16.mxu0 0
    %348 = vmatmul.mubr.bf16.gmra.mxu0 %v128
    %v349 = vpop.f32.mrf.mxu0
    %v350 = vadd.f32 %v158, %v349
    %v351 = vpop.f32.mrf.mxu0
    %v352 = vadd.f32 %v162, %v351
    %v353 = vpop.f32.mrf.mxu0
    %v354 = vadd.f32 %v158, %v353
    %v355 = vpop.f32.mrf.mxu0
    %v356 = vadd.f32 %v162, %v355
    %357 = vmatprep.mubr.bf16.mxu0 0
    %358 = vmatmul.mubr.bf16.gmra.mxu0 %v129
    %v359 = vpop.f32.mrf.mxu0
    %v360 = vadd.f32 %v158, %v359
    %v361 = vpop.f32.mrf.mxu0
    %v362 = vadd.f32 %v162, %v361
    %v363 = vpop.f32.mrf.mxu0
    %v364 = vadd.f32 %v158, %v363
    %v365 = vpop.f32.mrf.mxu0
    %v366 = vadd.f32 %v162, %v365
    %367 = vmatprep.mubr.bf16.mxu0 0
    %368 = vmatmul.mubr.bf16.gmra.mxu0 %v130
    %v369 = vpop.f32.mrf.mxu0
    %v370 = vadd.f32 %v158, %v369
    %v371 = vpop.f32.mrf.mxu0
    %v372 = vadd.f32 %v162, %v371
    %v373 = vpop.f32.mrf.mxu0
    %v374 = vadd.f32 %v158, %v373
    %v375 = vpop.f32.mrf.mxu0
    %v376 = vadd.f32 %v162, %v375
    %377 = vmatprep.mubr.bf16.mxu0 0
    %378 = vmatmul.mubr.bf16.gmra.mxu0 %v131
    %v379 = vpop.f32.mrf.mxu0
    %v380 = vadd.f32 %v158, %v379
    %v381 = vpop.f32.mrf.mxu0
    %v382 = vadd.f32 %v162, %v381
    %v383 = vpop.f32.mrf.mxu0
    %v384 = vadd.f32 %v158, %v383
    %v385 = vpop.f32.mrf.mxu0
    %v386 = vadd.f32 %v162, %v385
    %387 = vmatprep.mubr.bf16.mxu0 0
    %388 = vmatmul.mubr.bf16.gmra.mxu0 %v132
    %v389 = vpop.f32.mrf.mxu0
    %v390 = vadd.f32 %v158, %v389
    %v391 = vpop.f32.mrf.mxu0
    %v392 = vadd.f32 %v162, %v391
    %v393 = vpop.f32.mrf.mxu0
    %v394 = vadd.f32 %v158, %v393
    %v395 = vpop.f32.mrf.mxu0
    %v396 = vadd.f32 %v162, %v395
    %397 = vmatprep.mubr.bf16.mxu0 0
    %398 = vmatmul.mubr.bf16.gmra.mxu0 %v133
    %v399 = vpop.f32.mrf.mxu0
    %v400 = vadd.f32 %v158, %v399
    %v401 = vpop.f32.mrf.mxu0
    %v402 = vadd.f32 %v162, %v401
    %v403 = vpop.f32.mrf.mxu0
    %v404 = vadd.f32 %v158, %v403
    %v405 = vpop.f32.mrf.mxu0
    %v406 = vadd.f32 %v162, %v405
    %407 = vmatprep.mubr.bf16.mxu0 0
    %408 = vmatmul.mubr.bf16.gmra.mxu0 %v134
    %v409 = vpop.f32.mrf.mxu0
    %v410 = vadd.f32 %v158, %v409
    %v411 = vpop.f32.mrf.mxu0
    %v412 = vadd.f32 %v162, %v411
    %v413 = vpop.f32.mrf.mxu0
    %v414 = vadd.f32 %v158, %v413
    %v415 = vpop.f32.mrf.mxu0
    %v416 = vadd.f32 %v162, %v415
    %417 = vmatprep.mubr.bf16.mxu0 0
    %418 = vmatmul.mubr.bf16.gmra.mxu0 %v135
    %v419 = vpop.f32.mrf.mxu0
    %v420 = vadd.f32 %v158, %v419
    %v421 = vpop.f32.mrf.mxu0
    %v422 = vadd.f32 %v162, %v421
    %v423 = vpop.f32.mrf.mxu0
    %v424 = vadd.f32 %v158, %v423
    %v425 = vpop.f32.mrf.mxu0
    %v426 = vadd.f32 %v162, %v425
    %427 = vmatprep.mubr.bf16.mxu0 0
    %428 = vmatmul.mubr.bf16.gmra.mxu0 %v136
    %v429 = vpop.f32.mrf.mxu0
    %v430 = vadd.f32 %v158, %v429
    %v431 = vpop.f32.mrf.mxu0
    %v432 = vadd.f32 %v162, %v431
    %v433 = vpop.f32.mrf.mxu0
    %v434 = vadd.f32 %v158, %v433
    %v435 = vpop.f32.mrf.mxu0
    %v436 = vadd.f32 %v162, %v435
    %437 = vdwg.mxu0
    %v438 = vld [vmem:[#allocation8] sm:$0xff]
    %v439 = vld [vmem:[#allocation8 + $0x8] sm:$0xff]
    %v440 = vld [vmem:[#allocation8 + $0x10] sm:$0xff]
    %v441 = vld [vmem:[#allocation8 + $0x18] sm:$0xff]
    %v442 = vld [vmem:[#allocation8 + $0x20] sm:$0xff]
    %v443 = vld [vmem:[#allocation8 + $0x28] sm:$0xff]
    %v444 = vld [vmem:[#allocation8 + $0x30] sm:$0xff]
    %v445 = vld [vmem:[#allocation8 + $0x38] sm:$0xff]
    %v446 = vld [vmem:[#allocation8 + $0x40] sm:$0xff]
    %v447 = vld [vmem:[#allocation8 + $0x48] sm:$0xff]
    %v448 = vld [vmem:[#allocation8 + $0x50] sm:$0xff]
    %v449 = vld [vmem:[#allocation8 + $0x58] sm:$0xff]
    %v450 = vld [vmem:[#allocation8 + $0x60] sm:$0xff]
    %v451 = vld [vmem:[#allocation8 + $0x68] sm:$0xff]
    %v452 = vld [vmem:[#allocation8 + $0x70] sm:$0xff]
    %v453 = vld [vmem:[#allocation8 + $0x78] sm:$0xff]
    %v454 = vld [vmem:[#allocation8 + $0x80] sm:$0xff]
    %v455 = vld [vmem:[#allocation8 + $0x88] sm:$0xff]
    %v456 = vld [vmem:[#allocation8 + $0x90] sm:$0xff]
    %v457 = vld [vmem:[#allocation8 + $0x98] sm:$0xff]
    %v458 = vld [vmem:[#allocation8 + $0xa0] sm:$0xff]
    %v459 = vld [vmem:[#allocation8 + $0xa8] sm:$0xff]
    %v460 = vld [vmem:[#allocation8 + $0xb0] sm:$0xff]
    %v461 = vld [vmem:[#allocation8 + $0xb8] sm:$0xff]
    %v462 = vld [vmem:[#allocation8 + $0xc0] sm:$0xff]
    %v463 = vld [vmem:[#allocation8 + $0xc8] sm:$0xff]
    %v464 = vld [vmem:[#allocation8 + $0xd0] sm:$0xff]
    %v465 = vld [vmem:[#allocation8 + $0xd8] sm:$0xff]
    %v466 = vld [vmem:[#allocation8 + $0xe0] sm:$0xff]
    %v467 = vld [vmem:[#allocation8 + $0xe8] sm:$0xff]
    %v468 = vld [vmem:[#allocation8 + $0xf0] sm:$0xff]
    %v469 = vld [vmem:[#allocation8 + $0xf8] sm:$0xff]
    %v470 = vmul.f32 %v280, %v438
    %v471 = vmul.f32 %v284, %v439
    %v472 = vmul.f32 %v290, %v440
    %v473 = vmul.f32 %v294, %v441
    %v474 = vmul.f32 %v300, %v442
    %v475 = vmul.f32 %v304, %v443
    %v476 = vmul.f32 %v310, %v444
    %v477 = vmul.f32 %v314, %v445
    %v478 = vmul.f32 %v320, %v446
    %v479 = vmul.f32 %v324, %v447
    %v480 = vmul.f32 %v330, %v448
    %v481 = vmul.f32 %v334, %v449
    %v482 = vmul.f32 %v340, %v450
    %v483 = vmul.f32 %v344, %v451
    %v484 = vmul.f32 %v350, %v452
    %v485 = vmul.f32 %v354, %v453
    %v486 = vmul.f32 %v360, %v454
    %v487 = vmul.f32 %v364, %v455
    %v488 = vmul.f32 %v370, %v456
    %v489 = vmul.f32 %v374, %v457
    %v490 = vmul.f32 %v380, %v458
    %v491 = vmul.f32 %v384, %v459
    %v492 = vmul.f32 %v390, %v460
    %v493 = vmul.f32 %v394, %v461
    %v494 = vmul.f32 %v400, %v462
    %v495 = vmul.f32 %v404, %v463
    %v496 = vmul.f32 %v410, %v464
    %v497 = vmul.f32 %v414, %v465
    %v498 = vmul.f32 %v420, %v466
    %v499 = vmul.f32 %v424, %v467
    %v500 = vmul.f32 %v430, %v468
    %v501 = vmul.f32 %v434, %v469
    %v502 = vmul.f32 %v282, %v438
    %v503 = vmul.f32 %v286, %v439
    %v504 = vmul.f32 %v292, %v440
    %v505 = vmul.f32 %v296, %v441
    %v506 = vmul.f32 %v302, %v442
    %v507 = vmul.f32 %v306, %v443
    %v508 = vmul.f32 %v312, %v444
    %v509 = vmul.f32 %v316, %v445
    %v510 = vmul.f32 %v322, %v446
    %v511 = vmul.f32 %v326, %v447
    %v512 = vmul.f32 %v332, %v448
    %v513 = vmul.f32 %v336, %v449
    %v514 = vmul.f32 %v342, %v450
    %v515 = vmul.f32 %v346, %v451
    %v516 = vmul.f32 %v352, %v452
    %v517 = vmul.f32 %v356, %v453
    %v518 = vmul.f32 %v362, %v454
    %v519 = vmul.f32 %v366, %v455
    %v520 = vmul.f32 %v372, %v456
    %v521 = vmul.f32 %v376, %v457
    %v522 = vmul.f32 %v382, %v458
    %v523 = vmul.f32 %v386, %v459
    %v524 = vmul.f32 %v392, %v460
    %v525 = vmul.f32 %v396, %v461
    %v526 = vmul.f32 %v402, %v462
    %v527 = vmul.f32 %v406, %v463
    %v528 = vmul.f32 %v412, %v464
    %v529 = vmul.f32 %v416, %v465
    %v530 = vmul.f32 %v422, %v466
    %v531 = vmul.f32 %v426, %v467
    %v532 = vmul.f32 %v432, %v468
    %v533 = vmul.f32 %v436, %v469
    %534 = vrot.lane.b32.xlu0 %v470, 64
    %v535 = vpop.permute.xlu0 %534
    %536 = vrot.lane.b32.xlu0 %v471, 64
    %v537 = vpop.permute.xlu0 %536
    %538 = vrot.lane.b32.xlu0 %v472, 64
    %v539 = vpop.permute.xlu0 %538
    %540 = vrot.lane.b32.xlu0 %v473, 64
    %v541 = vpop.permute.xlu0 %540
    %542 = vrot.lane.b32.xlu0 %v474, 64
    %v543 = vpop.permute.xlu0 %542
    %544 = vrot.lane.b32.xlu0 %v475, 64
    %v545 = vpop.permute.xlu0 %544
    %546 = vrot.lane.b32.xlu0 %v476, 64
    %v547 = vpop.permute.xlu0 %546
    %548 = vrot.lane.b32.xlu0 %v477, 64
    %v549 = vpop.permute.xlu0 %548
    %550 = vrot.lane.b32.xlu0 %v478, 64
    %v551 = vpop.permute.xlu0 %550
    %552 = vrot.lane.b32.xlu0 %v479, 64
    %v553 = vpop.permute.xlu0 %552
    %554 = vrot.lane.b32.xlu0 %v480, 64
    %v555 = vpop.permute.xlu0 %554
    %556 = vrot.lane.b32.xlu0 %v481, 64
    %v557 = vpop.permute.xlu0 %556
    %558 = vrot.lane.b32.xlu0 %v482, 64
    %v559 = vpop.permute.xlu0 %558
    %560 = vrot.lane.b32.xlu0 %v483, 64
    %v561 = vpop.permute.xlu0 %560
    %562 = vrot.lane.b32.xlu0 %v484, 64
    %v563 = vpop.permute.xlu0 %562
    %564 = vrot.lane.b32.xlu0 %v485, 64
    %v565 = vpop.permute.xlu0 %564
    %566 = vrot.lane.b32.xlu0 %v486, 64
    %v567 = vpop.permute.xlu0 %566
    %568 = vrot.lane.b32.xlu0 %v487, 64
    %v569 = vpop.permute.xlu0 %568
    %570 = vrot.lane.b32.xlu0 %v488, 64
    %v571 = vpop.permute.xlu0 %570
    %572 = vrot.lane.b32.xlu0 %v489, 64
    %v573 = vpop.permute.xlu0 %572
    %574 = vrot.lane.b32.xlu0 %v490, 64
    %v575 = vpop.permute.xlu0 %574
    %576 = vrot.lane.b32.xlu0 %v491, 64
    %v577 = vpop.permute.xlu0 %576
    %578 = vrot.lane.b32.xlu0 %v492, 64
    %v579 = vpop.permute.xlu0 %578
    %580 = vrot.lane.b32.xlu0 %v493, 64
    %v581 = vpop.permute.xlu0 %580
    %582 = vrot.lane.b32.xlu0 %v494, 64
    %v583 = vpop.permute.xlu0 %582
    %584 = vrot.lane.b32.xlu0 %v495, 64
    %v585 = vpop.permute.xlu0 %584
    %586 = vrot.lane.b32.xlu0 %v496, 64
    %v587 = vpop.permute.xlu0 %586
    %588 = vrot.lane.b32.xlu0 %v497, 64
    %v589 = vpop.permute.xlu0 %588
    %590 = vrot.lane.b32.xlu0 %v498, 64
    %v591 = vpop.permute.xlu0 %590
    %592 = vrot.lane.b32.xlu0 %v499, 64
    %v593 = vpop.permute.xlu0 %592
    %594 = vrot.lane.b32.xlu0 %v500, 64
    %v595 = vpop.permute.xlu0 %594
    %596 = vrot.lane.b32.xlu0 %v501, 64
    %v597 = vpop.permute.xlu0 %596
    %v598 = vadd.f32 %v470, %v535
    %v599 = vadd.f32 %v471, %v537
    %v600 = vadd.f32 %v472, %v539
    %v601 = vadd.f32 %v473, %v541
    %v602 = vadd.f32 %v474, %v543
    %v603 = vadd.f32 %v475, %v545
    %v604 = vadd.f32 %v476, %v547
    %v605 = vadd.f32 %v477, %v549
    %v606 = vadd.f32 %v478, %v551
    %v607 = vadd.f32 %v479, %v553
    %v608 = vadd.f32 %v480, %v555
    %v609 = vadd.f32 %v481, %v557
    %v610 = vadd.f32 %v482, %v559
    %v611 = vadd.f32 %v483, %v561
    %v612 = vadd.f32 %v484, %v563
    %v613 = vadd.f32 %v485, %v565
    %v614 = vadd.f32 %v486, %v567
    %v615 = vadd.f32 %v487, %v569
    %v616 = vadd.f32 %v488, %v571
    %v617 = vadd.f32 %v489, %v573
    %v618 = vadd.f32 %v490, %v575
    %v619 = vadd.f32 %v491, %v577
    %v620 = vadd.f32 %v492, %v579
    %v621 = vadd.f32 %v493, %v581
    %v622 = vadd.f32 %v494, %v583
    %v623 = vadd.f32 %v495, %v585
    %v624 = vadd.f32 %v496, %v587
    %v625 = vadd.f32 %v497, %v589
    %v626 = vadd.f32 %v498, %v591
    %v627 = vadd.f32 %v499, %v593
    %v628 = vadd.f32 %v500, %v595
    %v629 = vadd.f32 %v501, %v597
    %v630 = vmul.f32 %v598, 0.0625
    %v631 = vmul.f32 %v599, 0.0625
    %v632 = vmul.f32 %v600, 0.0625
    %v633 = vmul.f32 %v601, 0.0625
    %v634 = vmul.f32 %v602, 0.0625
    %v635 = vmul.f32 %v603, 0.0625
    %v636 = vmul.f32 %v604, 0.0625
    %v637 = vmul.f32 %v605, 0.0625
    %v638 = vmul.f32 %v606, 0.0625
    %v639 = vmul.f32 %v607, 0.0625
    %v640 = vmul.f32 %v608, 0.0625
    %v641 = vmul.f32 %v609, 0.0625
    %v642 = vmul.f32 %v610, 0.0625
    %v643 = vmul.f32 %v611, 0.0625
    %v644 = vmul.f32 %v612, 0.0625
    %v645 = vmul.f32 %v613, 0.0625
    %v646 = vmul.f32 %v614, 0.0625
    %v647 = vmul.f32 %v615, 0.0625
    %v648 = vmul.f32 %v616, 0.0625
    %v649 = vmul.f32 %v617, 0.0625
    %v650 = vmul.f32 %v618, 0.0625
    %v651 = vmul.f32 %v619, 0.0625
    %v652 = vmul.f32 %v620, 0.0625
    %v653 = vmul.f32 %v621, 0.0625
    %v654 = vmul.f32 %v622, 0.0625
    %v655 = vmul.f32 %v623, 0.0625
    %v656 = vmul.f32 %v624, 0.0625
    %v657 = vmul.f32 %v625, 0.0625
    %v658 = vmul.f32 %v626, 0.0625
    %v659 = vmul.f32 %v627, 0.0625
    %v660 = vmul.f32 %v628, 0.0625
    %v661 = vmul.f32 %v629, 0.0625
    %662 = vrot.lane.b32.xlu0 %v502, 64
    %v663 = vpop.permute.xlu0 %662
    %664 = vrot.lane.b32.xlu0 %v503, 64
    %v665 = vpop.permute.xlu0 %664
    %666 = vrot.lane.b32.xlu0 %v504, 64
    %v667 = vpop.permute.xlu0 %666
    %668 = vrot.lane.b32.xlu0 %v505, 64
    %v669 = vpop.permute.xlu0 %668
    %670 = vrot.lane.b32.xlu0 %v506, 64
    %v671 = vpop.permute.xlu0 %670
    %672 = vrot.lane.b32.xlu0 %v507, 64
    %v673 = vpop.permute.xlu0 %672
    %674 = vrot.lane.b32.xlu0 %v508, 64
    %v675 = vpop.permute.xlu0 %674
    %676 = vrot.lane.b32.xlu0 %v509, 64
    %v677 = vpop.permute.xlu0 %676
    %678 = vrot.lane.b32.xlu0 %v510, 64
    %v679 = vpop.permute.xlu0 %678
    %680 = vrot.lane.b32.xlu0 %v511, 64
    %v681 = vpop.permute.xlu0 %680
    %682 = vrot.lane.b32.xlu0 %v512, 64
    %v683 = vpop.permute.xlu0 %682
    %684 = vrot.lane.b32.xlu0 %v513, 64
    %v685 = vpop.permute.xlu0 %684
    %686 = vrot.lane.b32.xlu0 %v514, 64
    %v687 = vpop.permute.xlu0 %686
    %688 = vrot.lane.b32.xlu0 %v515, 64
    %v689 = vpop.permute.xlu0 %688
    %690 = vrot.lane.b32.xlu0 %v516, 64
    %v691 = vpop.permute.xlu0 %690
    %692 = vrot.lane.b32.xlu0 %v517, 64
    %v693 = vpop.permute.xlu0 %692
    %694 = vrot.lane.b32.xlu0 %v518, 64
    %v695 = vpop.permute.xlu0 %694
    %696 = vrot.lane.b32.xlu0 %v519, 64
    %v697 = vpop.permute.xlu0 %696
    %698 = vrot.lane.b32.xlu0 %v520, 64
    %v699 = vpop.permute.xlu0 %698
    %700 = vrot.lane.b32.xlu0 %v521, 64
    %v701 = vpop.permute.xlu0 %700
    %702 = vrot.lane.b32.xlu0 %v522, 64
    %v703 = vpop.permute.xlu0 %702
    %704 = vrot.lane.b32.xlu0 %v523, 64
    %v705 = vpop.permute.xlu0 %704
    %706 = vrot.lane.b32.xlu0 %v524, 64
    %v707 = vpop.permute.xlu0 %706
    %708 = vrot.lane.b32.xlu0 %v525, 64
    %v709 = vpop.permute.xlu0 %708
    %710 = vrot.lane.b32.xlu0 %v526, 64
    %v711 = vpop.permute.xlu0 %710
    %712 = vrot.lane.b32.xlu0 %v527, 64
    %v713 = vpop.permute.xlu0 %712
    %714 = vrot.lane.b32.xlu0 %v528, 64
    %v715 = vpop.permute.xlu0 %714
    %716 = vrot.lane.b32.xlu0 %v529, 64
    %v717 = vpop.permute.xlu0 %716
    %718 = vrot.lane.b32.xlu0 %v530, 64
    %v719 = vpop.permute.xlu0 %718
    %720 = vrot.lane.b32.xlu0 %v531, 64
    %v721 = vpop.permute.xlu0 %720
    %722 = vrot.lane.b32.xlu0 %v532, 64
    %v723 = vpop.permute.xlu0 %722
    %724 = vrot.lane.b32.xlu0 %v533, 64
    %v725 = vpop.permute.xlu0 %724
    %v726 = vadd.f32 %v502, %v663
    %v727 = vadd.f32 %v503, %v665
    %v728 = vadd.f32 %v504, %v667
    %v729 = vadd.f32 %v505, %v669
    %v730 = vadd.f32 %v506, %v671
    %v731 = vadd.f32 %v507, %v673
    %v732 = vadd.f32 %v508, %v675
    %v733 = vadd.f32 %v509, %v677
    %v734 = vadd.f32 %v510, %v679
    %v735 = vadd.f32 %v511, %v681
    %v736 = vadd.f32 %v512, %v683
    %v737 = vadd.f32 %v513, %v685
    %v738 = vadd.f32 %v514, %v687
    %v739 = vadd.f32 %v515, %v689
    %v740 = vadd.f32 %v516, %v691
    %v741 = vadd.f32 %v517, %v693
    %v742 = vadd.f32 %v518, %v695
    %v743 = vadd.f32 %v519, %v697
    %v744 = vadd.f32 %v520, %v699
    %v745 = vadd.f32 %v521, %v701
    %v746 = vadd.f32 %v522, %v703
    %v747 = vadd.f32 %v523, %v705
    %v748 = vadd.f32 %v524, %v707
    %v749 = vadd.f32 %v525, %v709
    %v750 = vadd.f32 %v526, %v711
    %v751 = vadd.f32 %v527, %v713
    %v752 = vadd.f32 %v528, %v715
    %v753 = vadd.f32 %v529, %v717
    %v754 = vadd.f32 %v530, %v719
    %v755 = vadd.f32 %v531, %v721
    %v756 = vadd.f32 %v532, %v723
    %v757 = vadd.f32 %v533, %v725
    %v758 = vpack.c.bf16 %v631, %v630
    %v759 = vpack.c.bf16 %v633, %v632
    %v760 = vpack.c.bf16 %v635, %v634
    %v761 = vpack.c.bf16 %v637, %v636
    %v762 = vpack.c.bf16 %v639, %v638
    %v763 = vpack.c.bf16 %v641, %v640
    %v764 = vpack.c.bf16 %v643, %v642
    %v765 = vpack.c.bf16 %v645, %v644
    %v766 = vpack.c.bf16 %v647, %v646
    %v767 = vpack.c.bf16 %v649, %v648
    %v768 = vpack.c.bf16 %v651, %v650
    %v769 = vpack.c.bf16 %v653, %v652
    %v770 = vpack.c.bf16 %v655, %v654
    %v771 = vpack.c.bf16 %v657, %v656
    %v772 = vpack.c.bf16 %v659, %v658
    %v773 = vpack.c.bf16 %v661, %v660
    %v774 = vpack.c.bf16 %v727, %v726
    %v775 = vpack.c.bf16 %v729, %v728
    %v776 = vpack.c.bf16 %v731, %v730
    %v777 = vpack.c.bf16 %v733, %v732
    %v778 = vpack.c.bf16 %v735, %v734
    %v779 = vpack.c.bf16 %v737, %v736
    %v780 = vpack.c.bf16 %v739, %v738
    %v781 = vpack.c.bf16 %v741, %v740
    %v782 = vpack.c.bf16 %v743, %v742
    %v783 = vpack.c.bf16 %v745, %v744
    %v784 = vpack.c.bf16 %v747, %v746
    %v785 = vpack.c.bf16 %v749, %v748
    %v786 = vpack.c.bf16 %v751, %v750
    %v787 = vpack.c.bf16 %v753, %v752
    %v788 = vpack.c.bf16 %v755, %v754
    %v789 = vpack.c.bf16 %v757, %v756
    %790 = vmatprep.subr.bf16.mxu0 0
    %791 = vmatpush1.bf16.xpose.msra.mxu0 %v781
    %792 = vmatprep.subr.bf16.mxu0 0
    %793 = vmatpush1.bf16.xpose.msra.mxu0 %v780
    %794 = vmatprep.subr.bf16.mxu0 0
    %795 = vmatpush1.bf16.xpose.msra.mxu0 %v779
    %796 = vmatprep.subr.bf16.mxu0 0
    %797 = vmatpush1.bf16.xpose.msra.mxu0 %v778
    %798 = vmatprep.subr.bf16.mxu0 0
    %799 = vmatpush1.bf16.xpose.msra.mxu0 %v777
    %800 = vmatprep.subr.bf16.mxu0 0
    %801 = vmatpush1.bf16.xpose.msra.mxu0 %v776
    %802 = vmatprep.subr.bf16.mxu0 0
    %803 = vmatpush1.bf16.xpose.msra.mxu0 %v775
    %804 = vmatprep.subr.bf16.mxu0 0
    %805 = vmatpush1.bf16.xpose.msra.mxu0 %v774
    %806 = vmatprep.subr.bf16.mxu0 0
    %807 = vmatpush2.bf16.xpose.msra.mxu0 0
    %808 = vmatprep.subr.bf16.mxu0 0
    %809 = vmatpush2.bf16.xpose.msra.mxu0 0
    %810 = vmatprep.subr.bf16.mxu0 0
    %811 = vmatpush2.bf16.xpose.msra.mxu0 0
    %812 = vmatprep.subr.bf16.mxu0 0
    %813 = vmatpush2.bf16.xpose.msra.mxu0 0
    %814 = vmatprep.subr.bf16.mxu0 0
    %815 = vmatpush2.bf16.xpose.msra.mxu0 0
    %816 = vmatprep.subr.bf16.mxu0 0
    %817 = vmatpush2.bf16.xpose.msra.mxu0 0
    %818 = vmatprep.subr.bf16.mxu0 0
    %819 = vmatpush2.bf16.xpose.msra.mxu0 0
    %820 = vmatprep.subr.bf16.mxu0 0
    %821 = vmatpush2.bf16.xpose.msra.mxu0 0
    %822 = vmatprep.mubr.bf16.mxu0 0
    %823 = vmatmul.mubr.bf16.gmra.mxu0 %v758
    %v824 = vpop.f32.mrf.mxu0
    %v825 = vadd.f32 0.0, %v824
    %v826 = vpop.f32.mrf.mxu0
    %v827 = vpop.f32.mrf.mxu0
    %v828 = vadd.f32 0.0, %v827
    %v829 = vpop.f32.mrf.mxu0
    %830 = vmatprep.mubr.bf16.mxu0 0
    %831 = vmatmul.mubr.bf16.gmra.mxu0 %v759
    %v832 = vpop.f32.mrf.mxu0
    %v833 = vadd.f32 0.0, %v832
    %v834 = vpop.f32.mrf.mxu0
    %v835 = vpop.f32.mrf.mxu0
    %v836 = vadd.f32 0.0, %v835
    %v837 = vpop.f32.mrf.mxu0
    %838 = vmatprep.mubr.bf16.mxu0 0
    %839 = vmatmul.mubr.bf16.gmra.mxu0 %v760
    %v840 = vpop.f32.mrf.mxu0
    %v841 = vadd.f32 0.0, %v840
    %v842 = vpop.f32.mrf.mxu0
    %v843 = vpop.f32.mrf.mxu0
    %v844 = vadd.f32 0.0, %v843
    %v845 = vpop.f32.mrf.mxu0
    %846 = vmatprep.mubr.bf16.mxu0 0
    %847 = vmatmul.mubr.bf16.gmra.mxu0 %v761
    %v848 = vpop.f32.mrf.mxu0
    %v849 = vadd.f32 0.0, %v848
    %v850 = vpop.f32.mrf.mxu0
    %v851 = vpop.f32.mrf.mxu0
    %v852 = vadd.f32 0.0, %v851
    %v853 = vpop.f32.mrf.mxu0
    %854 = vmatprep.mubr.bf16.mxu0 0
    %855 = vmatmul.mubr.bf16.gmra.mxu0 %v762
    %v856 = vpop.f32.mrf.mxu0
    %v857 = vadd.f32 0.0, %v856
    %v858 = vpop.f32.mrf.mxu0
    %v859 = vpop.f32.mrf.mxu0
    %v860 = vadd.f32 0.0, %v859
    %v861 = vpop.f32.mrf.mxu0
    %862 = vmatprep.mubr.bf16.mxu0 0
    %863 = vmatmul.mubr.bf16.gmra.mxu0 %v763
    %v864 = vpop.f32.mrf.mxu0
    %v865 = vadd.f32 0.0, %v864
    %v866 = vpop.f32.mrf.mxu0
    %v867 = vpop.f32.mrf.mxu0
    %v868 = vadd.f32 0.0, %v867
    %v869 = vpop.f32.mrf.mxu0
    %870 = vmatprep.mubr.bf16.mxu0 0
    %871 = vmatmul.mubr.bf16.gmra.mxu0 %v764
    %v872 = vpop.f32.mrf.mxu0
    %v873 = vadd.f32 0.0, %v872
    %v874 = vpop.f32.mrf.mxu0
    %v875 = vpop.f32.mrf.mxu0
    %v876 = vadd.f32 0.0, %v875
    %v877 = vpop.f32.mrf.mxu0
    %878 = vmatprep.mubr.bf16.mxu0 0
    %879 = vmatmul.mubr.bf16.gmra.mxu0 %v765
    %v880 = vpop.f32.mrf.mxu0
    %v881 = vadd.f32 0.0, %v880
    %v882 = vpop.f32.mrf.mxu0
    %v883 = vpop.f32.mrf.mxu0
    %v884 = vadd.f32 0.0, %v883
    %v885 = vpop.f32.mrf.mxu0
    %886 = vdwg.mxu0
    %887 = vmatprep.subr.bf16.mxu0 0
    %888 = vmatpush1.bf16.xpose.msra.mxu0 %v789
    %889 = vmatprep.subr.bf16.mxu0 0
    %890 = vmatpush1.bf16.xpose.msra.mxu0 %v788
    %891 = vmatprep.subr.bf16.mxu0 0
    %892 = vmatpush1.bf16.xpose.msra.mxu0 %v787
    %893 = vmatprep.subr.bf16.mxu0 0
    %894 = vmatpush1.bf16.xpose.msra.mxu0 %v786
    %895 = vmatprep.subr.bf16.mxu0 0
    %896 = vmatpush1.bf16.xpose.msra.mxu0 %v785
    %897 = vmatprep.subr.bf16.mxu0 0
    %898 = vmatpush1.bf16.xpose.msra.mxu0 %v784
    %899 = vmatprep.subr.bf16.mxu0 0
    %900 = vmatpush1.bf16.xpose.msra.mxu0 %v783
    %901 = vmatprep.subr.bf16.mxu0 0
    %902 = vmatpush1.bf16.xpose.msra.mxu0 %v782
    %903 = vmatprep.subr.bf16.mxu0 0
    %904 = vmatpush2.bf16.xpose.msra.mxu0 0
    %905 = vmatprep.subr.bf16.mxu0 0
    %906 = vmatpush2.bf16.xpose.msra.mxu0 0
    %907 = vmatprep.subr.bf16.mxu0 0
    %908 = vmatpush2.bf16.xpose.msra.mxu0 0
    %909 = vmatprep.subr.bf16.mxu0 0
    %910 = vmatpush2.bf16.xpose.msra.mxu0 0
    %911 = vmatprep.subr.bf16.mxu0 0
    %912 = vmatpush2.bf16.xpose.msra.mxu0 0
    %913 = vmatprep.subr.bf16.mxu0 0
    %914 = vmatpush2.bf16.xpose.msra.mxu0 0
    %915 = vmatprep.subr.bf16.mxu0 0
    %916 = vmatpush2.bf16.xpose.msra.mxu0 0
    %917 = vmatprep.subr.bf16.mxu0 0
    %918 = vmatpush2.bf16.xpose.msra.mxu0 0
    %919 = vmatprep.mubr.bf16.mxu0 0
    %920 = vmatmul.mubr.bf16.gmra.mxu0 %v766
    %v921 = vpop.f32.mrf.mxu0
    %v922 = vadd.f32 0.0, %v921
    %v923 = vpop.f32.mrf.mxu0
    %v924 = vpop.f32.mrf.mxu0
    %v925 = vadd.f32 0.0, %v924
    %v926 = vpop.f32.mrf.mxu0
    %927 = vmatprep.mubr.bf16.mxu0 0
    %928 = vmatmul.mubr.bf16.gmra.mxu0 %v767
    %v929 = vpop.f32.mrf.mxu0
    %v930 = vadd.f32 0.0, %v929
    %v931 = vpop.f32.mrf.mxu0
    %v932 = vpop.f32.mrf.mxu0
    %v933 = vadd.f32 0.0, %v932
    %v934 = vpop.f32.mrf.mxu0
    %935 = vmatprep.mubr.bf16.mxu0 0
    %936 = vmatmul.mubr.bf16.gmra.mxu0 %v768
    %v937 = vpop.f32.mrf.mxu0
    %v938 = vadd.f32 0.0, %v937
    %v939 = vpop.f32.mrf.mxu0
    %v940 = vpop.f32.mrf.mxu0
    %v941 = vadd.f32 0.0, %v940
    %v942 = vpop.f32.mrf.mxu0
    %943 = vmatprep.mubr.bf16.mxu0 0
    %944 = vmatmul.mubr.bf16.gmra.mxu0 %v769
    %v945 = vpop.f32.mrf.mxu0
    %v946 = vadd.f32 0.0, %v945
    %v947 = vpop.f32.mrf.mxu0
    %v948 = vpop.f32.mrf.mxu0
    %v949 = vadd.f32 0.0, %v948
    %v950 = vpop.f32.mrf.mxu0
    %951 = vmatprep.mubr.bf16.mxu0 0
    %952 = vmatmul.mubr.bf16.gmra.mxu0 %v770
    %v953 = vpop.f32.mrf.mxu0
    %v954 = vadd.f32 0.0, %v953
    %v955 = vpop.f32.mrf.mxu0
    %v956 = vpop.f32.mrf.mxu0
    %v957 = vadd.f32 0.0, %v956
    %v958 = vpop.f32.mrf.mxu0
    %959 = vmatprep.mubr.bf16.mxu0 0
    %960 = vmatmul.mubr.bf16.gmra.mxu0 %v771
    %v961 = vpop.f32.mrf.mxu0
    %v962 = vadd.f32 0.0, %v961
    %v963 = vpop.f32.mrf.mxu0
    %v964 = vpop.f32.mrf.mxu0
    %v965 = vadd.f32 0.0, %v964
    %v966 = vpop.f32.mrf.mxu0
    %967 = vmatprep.mubr.bf16.mxu0 0
    %968 = vmatmul.mubr.bf16.gmra.mxu0 %v772
    %v969 = vpop.f32.mrf.mxu0
    %v970 = vadd.f32 0.0, %v969
    %v971 = vpop.f32.mrf.mxu0
    %v972 = vpop.f32.mrf.mxu0
    %v973 = vadd.f32 0.0, %v972
    %v974 = vpop.f32.mrf.mxu0
    %975 = vmatprep.mubr.bf16.mxu0 0
    %976 = vmatmul.mubr.bf16.gmra.mxu0 %v773
    %v977 = vpop.f32.mrf.mxu0
    %v978 = vadd.f32 0.0, %v977
    %v979 = vpop.f32.mrf.mxu0
    %v980 = vpop.f32.mrf.mxu0
    %v981 = vadd.f32 0.0, %v980
    %v982 = vpop.f32.mrf.mxu0
    %983 = vdwg.mxu0
    %v984 = vld [vmem:[%s1] sm:$0xff]
    %v985 = vld [vmem:[%s1 + $0x8] sm:$0xff]
    %v986 = vld [vmem:[%s1 + $0x10] sm:$0xff]
    %v987 = vld [vmem:[%s1 + $0x18] sm:$0xff]
    %v988 = vld [vmem:[%s1 + $0x20] sm:$0xff]
    %v989 = vld [vmem:[%s1 + $0x28] sm:$0xff]
    %v990 = vld [vmem:[%s1 + $0x30] sm:$0xff]
    %v991 = vld [vmem:[%s1 + $0x38] sm:$0xff]
    %v992 = vld [vmem:[%s1 + $0x40] sm:$0xff]
    %v993 = vld [vmem:[%s1 + $0x48] sm:$0xff]
    %v994 = vld [vmem:[%s1 + $0x50] sm:$0xff]
    %v995 = vld [vmem:[%s1 + $0x58] sm:$0xff]
    %v996 = vld [vmem:[%s1 + $0x60] sm:$0xff]
    %v997 = vld [vmem:[%s1 + $0x68] sm:$0xff]
    %v998 = vld [vmem:[%s1 + $0x70] sm:$0xff]
    %v999 = vld [vmem:[%s1 + $0x78] sm:$0xff]
    %v1000 = vld [vmem:[%s1 + $0x80] sm:$0xff]
    %v1001 = vld [vmem:[%s1 + $0x88] sm:$0xff]
    %v1002 = vld [vmem:[%s1 + $0x90] sm:$0xff]
    %v1003 = vld [vmem:[%s1 + $0x98] sm:$0xff]
    %v1004 = vld [vmem:[%s1 + $0xa0] sm:$0xff]
    %v1005 = vld [vmem:[%s1 + $0xa8] sm:$0xff]
    %v1006 = vld [vmem:[%s1 + $0xb0] sm:$0xff]
    %v1007 = vld [vmem:[%s1 + $0xb8] sm:$0xff]
    %v1008 = vld [vmem:[%s1 + $0xc0] sm:$0xff]
    %v1009 = vld [vmem:[%s1 + $0xc8] sm:$0xff]
    %v1010 = vld [vmem:[%s1 + $0xd0] sm:$0xff]
    %v1011 = vld [vmem:[%s1 + $0xd8] sm:$0xff]
    %v1012 = vld [vmem:[%s1 + $0xe0] sm:$0xff]
    %v1013 = vld [vmem:[%s1 + $0xe8] sm:$0xff]
    %v1014 = vld [vmem:[%s1 + $0xf0] sm:$0xff]
    %v1015 = vld [vmem:[%s1 + $0xf8] sm:$0xff]
    %v1016 = vld [vmem:[%s2] sm:$0x1]
    %v1017 = vld [vmem:[%s2 + $0x1] sm:$0x1]
    %1019 = vset.pattern.permute.xlu0 0
    %1020 = vperm.xlu0 %1019, %v984
    %v1021 = vpop.permute.xlu0 %1020
    %1024 = vset.pattern.permute.xlu0 0
    %1025 = vperm.xlu0 %1024, %v985
    %v1026 = vpop.permute.xlu0 %1025
    %1029 = vset.pattern.permute.xlu0 0
    %1030 = vperm.xlu0 %1029, %v986
    %v1031 = vpop.permute.xlu0 %1030
    %1034 = vset.pattern.permute.xlu0 0
    %1035 = vperm.xlu0 %1034, %v987
    %v1036 = vpop.permute.xlu0 %1035
    %1039 = vset.pattern.permute.xlu0 0
    %1040 = vperm.xlu0 %1039, %v988
    %v1041 = vpop.permute.xlu0 %1040
    %1044 = vset.pattern.permute.xlu0 0
    %1045 = vperm.xlu0 %1044, %v989
    %v1046 = vpop.permute.xlu0 %1045
    %1049 = vset.pattern.permute.xlu0 0
    %1050 = vperm.xlu0 %1049, %v990
    %v1051 = vpop.permute.xlu0 %1050
    %1054 = vset.pattern.permute.xlu0 0
    %1055 = vperm.xlu0 %1054, %v991
    %v1056 = vpop.permute.xlu0 %1055
    %1059 = vset.pattern.permute.xlu0 0
    %1060 = vperm.xlu0 %1059, %v992
    %v1061 = vpop.permute.xlu0 %1060
    %1064 = vset.pattern.permute.xlu0 0
    %1065 = vperm.xlu0 %1064, %v993
    %v1066 = vpop.permute.xlu0 %1065
    %1069 = vset.pattern.permute.xlu0 0
    %1070 = vperm.xlu0 %1069, %v994
    %v1071 = vpop.permute.xlu0 %1070
    %1074 = vset.pattern.permute.xlu0 0
    %1075 = vperm.xlu0 %1074, %v995
    %v1076 = vpop.permute.xlu0 %1075
    %1079 = vset.pattern.permute.xlu0 0
    %1080 = vperm.xlu0 %1079, %v996
    %v1081 = vpop.permute.xlu0 %1080
    %1084 = vset.pattern.permute.xlu0 0
    %1085 = vperm.xlu0 %1084, %v997
    %v1086 = vpop.permute.xlu0 %1085
    %1089 = vset.pattern.permute.xlu0 0
    %1090 = vperm.xlu0 %1089, %v998
    %v1091 = vpop.permute.xlu0 %1090
    %1094 = vset.pattern.permute.xlu0 0
    %1095 = vperm.xlu0 %1094, %v999
    %v1096 = vpop.permute.xlu0 %1095
    %1099 = vset.pattern.permute.xlu0 0
    %1100 = vperm.xlu0 %1099, %v1000
    %v1101 = vpop.permute.xlu0 %1100
    %1104 = vset.pattern.permute.xlu0 0
    %1105 = vperm.xlu0 %1104, %v1001
    %v1106 = vpop.permute.xlu0 %1105
    %1109 = vset.pattern.permute.xlu0 0
    %1110 = vperm.xlu0 %1109, %v1002
    %v1111 = vpop.permute.xlu0 %1110
    %1114 = vset.pattern.permute.xlu0 0
    %1115 = vperm.xlu0 %1114, %v1003
    %v1116 = vpop.permute.xlu0 %1115
    %1119 = vset.pattern.permute.xlu0 0
    %1120 = vperm.xlu0 %1119, %v1004
    %v1121 = vpop.permute.xlu0 %1120
    %1124 = vset.pattern.permute.xlu0 0
    %1125 = vperm.xlu0 %1124, %v1005
    %v1126 = vpop.permute.xlu0 %1125
    %1129 = vset.pattern.permute.xlu0 0
    %1130 = vperm.xlu0 %1129, %v1006
    %v1131 = vpop.permute.xlu0 %1130
    %1134 = vset.pattern.permute.xlu0 0
    %1135 = vperm.xlu0 %1134, %v1007
    %v1136 = vpop.permute.xlu0 %1135
    %1139 = vset.pattern.permute.xlu0 0
    %1140 = vperm.xlu0 %1139, %v1008
    %v1141 = vpop.permute.xlu0 %1140
    %1144 = vset.pattern.permute.xlu0 0
    %1145 = vperm.xlu0 %1144, %v1009
    %v1146 = vpop.permute.xlu0 %1145
    %1149 = vset.pattern.permute.xlu0 0
    %1150 = vperm.xlu0 %1149, %v1010
    %v1151 = vpop.permute.xlu0 %1150
    %1154 = vset.pattern.permute.xlu0 0
    %1155 = vperm.xlu0 %1154, %v1011
    %v1156 = vpop.permute.xlu0 %1155
    %1159 = vset.pattern.permute.xlu0 0
    %1160 = vperm.xlu0 %1159, %v1012
    %v1161 = vpop.permute.xlu0 %1160
    %1164 = vset.pattern.permute.xlu0 0
    %1165 = vperm.xlu0 %1164, %v1013
    %v1166 = vpop.permute.xlu0 %1165
    %1169 = vset.pattern.permute.xlu0 0
    %1170 = vperm.xlu0 %1169, %v1014
    %v1171 = vpop.permute.xlu0 %1170
    %1174 = vset.pattern.permute.xlu0 0
    %1175 = vperm.xlu0 %1174, %v1015
    %v1176 = vpop.permute.xlu0 %1175
    %v1180 = vlaneseq
    %v1181 = vshrl.u32 %v1180, 7
    %v1182 = vsub.s32 0, %v1181
    %v1183 = vrot.slane %v1016, %v1182
    %v1184 = vlaneseq
    %v1185 = vshrl.u32 %v1184, 7
    %v1186 = vsub.s32 0, %v1185
    %v1187 = vrot.slane %v1017, %v1186
    %v1190 = vmul.f32 %v1021, %v1183
    %v1191 = vmul.f32 %v1026, %v1183
    %v1192 = vmul.f32 %v1031, %v1183
    %v1193 = vmul.f32 %v1036, %v1183
    %v1194 = vmul.f32 %v1041, %v1183
    %v1195 = vmul.f32 %v1046, %v1183
    %v1196 = vmul.f32 %v1051, %v1183
    %v1197 = vmul.f32 %v1056, %v1183
    %v1198 = vmul.f32 %v1061, %v1183
    %v1199 = vmul.f32 %v1066, %v1183
    %v1200 = vmul.f32 %v1071, %v1183
    %v1201 = vmul.f32 %v1076, %v1183
    %v1202 = vmul.f32 %v1081, %v1183
    %v1203 = vmul.f32 %v1086, %v1183
    %v1204 = vmul.f32 %v1091, %v1183
    %v1205 = vmul.f32 %v1096, %v1183
    %v1206 = vmul.f32 %v1101, %v1187
    %v1207 = vmul.f32 %v1106, %v1187
    %v1208 = vmul.f32 %v1111, %v1187
    %v1209 = vmul.f32 %v1116, %v1187
    %v1210 = vmul.f32 %v1121, %v1187
    %v1211 = vmul.f32 %v1126, %v1187
    %v1212 = vmul.f32 %v1131, %v1187
    %v1213 = vmul.f32 %v1136, %v1187
    %v1214 = vmul.f32 %v1141, %v1187
    %v1215 = vmul.f32 %v1146, %v1187
    %v1216 = vmul.f32 %v1151, %v1187
    %v1217 = vmul.f32 %v1156, %v1187
    %v1218 = vmul.f32 %v1161, %v1187
    %v1219 = vmul.f32 %v1166, %v1187
    %v1220 = vmul.f32 %v1171, %v1187
    %v1221 = vmul.f32 %v1176, %v1187
    %v1222 = vmul.f32 %v825, %v1190
    %v1223 = vmul.f32 %v828, %v1191
    %v1224 = vmul.f32 %v833, %v1192
    %v1225 = vmul.f32 %v836, %v1193
    %v1226 = vmul.f32 %v841, %v1194
    %v1227 = vmul.f32 %v844, %v1195
    %v1228 = vmul.f32 %v849, %v1196
    %v1229 = vmul.f32 %v852, %v1197
    %v1230 = vmul.f32 %v857, %v1198
    %v1231 = vmul.f32 %v860, %v1199
    %v1232 = vmul.f32 %v865, %v1200
    %v1233 = vmul.f32 %v868, %v1201
    %v1234 = vmul.f32 %v873, %v1202
    %v1235 = vmul.f32 %v876, %v1203
    %v1236 = vmul.f32 %v881, %v1204
    %v1237 = vmul.f32 %v884, %v1205
    %v1238 = vmul.f32 %v922, %v1206
    %v1239 = vmul.f32 %v925, %v1207
    %v1240 = vmul.f32 %v930, %v1208
    %v1241 = vmul.f32 %v933, %v1209
    %v1242 = vmul.f32 %v938, %v1210
    %v1243 = vmul.f32 %v941, %v1211
    %v1244 = vmul.f32 %v946, %v1212
    %v1245 = vmul.f32 %v949, %v1213
    %v1246 = vmul.f32 %v954, %v1214
    %v1247 = vmul.f32 %v957, %v1215
    %v1248 = vmul.f32 %v962, %v1216
    %v1249 = vmul.f32 %v965, %v1217
    %v1250 = vmul.f32 %v970, %v1218
    %v1251 = vmul.f32 %v973, %v1219
    %v1252 = vmul.f32 %v978, %v1220
    %v1253 = vmul.f32 %v981, %v1221
    %v1254 = vsub.f32 1.0, %v1190
    %v1255 = vsub.f32 1.0, %v1191
    %v1256 = vsub.f32 1.0, %v1192
    %v1257 = vsub.f32 1.0, %v1193
    %v1258 = vsub.f32 1.0, %v1194
    %v1259 = vsub.f32 1.0, %v1195
    %v1260 = vsub.f32 1.0, %v1196
    %v1261 = vsub.f32 1.0, %v1197
    %v1262 = vsub.f32 1.0, %v1198
    %v1263 = vsub.f32 1.0, %v1199
    %v1264 = vsub.f32 1.0, %v1200
    %v1265 = vsub.f32 1.0, %v1201
    %v1266 = vsub.f32 1.0, %v1202
    %v1267 = vsub.f32 1.0, %v1203
    %v1268 = vsub.f32 1.0, %v1204
    %v1269 = vsub.f32 1.0, %v1205
    %v1270 = vsub.f32 1.0, %v1206
    %v1271 = vsub.f32 1.0, %v1207
    %v1272 = vsub.f32 1.0, %v1208
    %v1273 = vsub.f32 1.0, %v1209
    %v1274 = vsub.f32 1.0, %v1210
    %v1275 = vsub.f32 1.0, %v1211
    %v1276 = vsub.f32 1.0, %v1212
    %v1277 = vsub.f32 1.0, %v1213
    %v1278 = vsub.f32 1.0, %v1214
    %v1279 = vsub.f32 1.0, %v1215
    %v1280 = vsub.f32 1.0, %v1216
    %v1281 = vsub.f32 1.0, %v1217
    %v1282 = vsub.f32 1.0, %v1218
    %v1283 = vsub.f32 1.0, %v1219
    %v1284 = vsub.f32 1.0, %v1220
    %v1285 = vsub.f32 1.0, %v1221
    %v1286 = vmul.f32 %v1254, 1.25e+11
    %v1287 = vmul.f32 %v1255, 1.25e+11
    %v1288 = vmul.f32 %v1256, 1.25e+11
    %v1289 = vmul.f32 %v1257, 1.25e+11
    %v1290 = vmul.f32 %v1258, 1.25e+11
    %v1291 = vmul.f32 %v1259, 1.25e+11
    %v1292 = vmul.f32 %v1260, 1.25e+11
    %v1293 = vmul.f32 %v1261, 1.25e+11
    %v1294 = vmul.f32 %v1262, 1.25e+11
    %v1295 = vmul.f32 %v1263, 1.25e+11
    %v1296 = vmul.f32 %v1264, 1.25e+11
    %v1297 = vmul.f32 %v1265, 1.25e+11
    %v1298 = vmul.f32 %v1266, 1.25e+11
    %v1299 = vmul.f32 %v1267, 1.25e+11
    %v1300 = vmul.f32 %v1268, 1.25e+11
    %v1301 = vmul.f32 %v1269, 1.25e+11
    %v1302 = vmul.f32 %v1270, 1.25e+11
    %v1303 = vmul.f32 %v1271, 1.25e+11
    %v1304 = vmul.f32 %v1272, 1.25e+11
    %v1305 = vmul.f32 %v1273, 1.25e+11
    %v1306 = vmul.f32 %v1274, 1.25e+11
    %v1307 = vmul.f32 %v1275, 1.25e+11
    %v1308 = vmul.f32 %v1276, 1.25e+11
    %v1309 = vmul.f32 %v1277, 1.25e+11
    %v1310 = vmul.f32 %v1278, 1.25e+11
    %v1311 = vmul.f32 %v1279, 1.25e+11
    %v1312 = vmul.f32 %v1280, 1.25e+11
    %v1313 = vmul.f32 %v1281, 1.25e+11
    %v1314 = vmul.f32 %v1282, 1.25e+11
    %v1315 = vmul.f32 %v1283, 1.25e+11
    %v1316 = vmul.f32 %v1284, 1.25e+11
    %v1317 = vmul.f32 %v1285, 1.25e+11
    %v1318 = vsub.f32 %v1222, %v1286
    %v1319 = vsub.f32 %v1223, %v1287
    %v1320 = vsub.f32 %v1224, %v1288
    %v1321 = vsub.f32 %v1225, %v1289
    %v1322 = vsub.f32 %v1226, %v1290
    %v1323 = vsub.f32 %v1227, %v1291
    %v1324 = vsub.f32 %v1228, %v1292
    %v1325 = vsub.f32 %v1229, %v1293
    %v1326 = vsub.f32 %v1230, %v1294
    %v1327 = vsub.f32 %v1231, %v1295
    %v1328 = vsub.f32 %v1232, %v1296
    %v1329 = vsub.f32 %v1233, %v1297
    %v1330 = vsub.f32 %v1234, %v1298
    %v1331 = vsub.f32 %v1235, %v1299
    %v1332 = vsub.f32 %v1236, %v1300
    %v1333 = vsub.f32 %v1237, %v1301
    %v1334 = vsub.f32 %v1238, %v1302
    %v1335 = vsub.f32 %v1239, %v1303
    %v1336 = vsub.f32 %v1240, %v1304
    %v1337 = vsub.f32 %v1241, %v1305
    %v1338 = vsub.f32 %v1242, %v1306
    %v1339 = vsub.f32 %v1243, %v1307
    %v1340 = vsub.f32 %v1244, %v1308
    %v1341 = vsub.f32 %v1245, %v1309
    %v1342 = vsub.f32 %v1246, %v1310
    %v1343 = vsub.f32 %v1247, %v1311
    %v1344 = vsub.f32 %v1248, %v1312
    %v1345 = vsub.f32 %v1249, %v1313
    %v1346 = vsub.f32 %v1250, %v1314
    %v1347 = vsub.f32 %v1251, %v1315
    %v1348 = vsub.f32 %v1252, %v1316
    %v1349 = vsub.f32 %v1253, %v1317
    %v1350 = vld [vmem:[#allocation5] sm:$0xff]
    %v1351 = vld [vmem:[#allocation5 + $0x8] sm:$0xff]
    %v1352 = vld [vmem:[#allocation5 + $0x10] sm:$0xff]
    %v1353 = vld [vmem:[#allocation5 + $0x18] sm:$0xff]
    %v1354 = vld [vmem:[#allocation5 + $0x20] sm:$0xff]
    %v1355 = vld [vmem:[#allocation5 + $0x28] sm:$0xff]
    %v1356 = vld [vmem:[#allocation5 + $0x30] sm:$0xff]
    %v1357 = vld [vmem:[#allocation5 + $0x38] sm:$0xff]
    %v1358 = vld [vmem:[#allocation5 + $0x40] sm:$0xff]
    %v1359 = vld [vmem:[#allocation5 + $0x48] sm:$0xff]
    %v1360 = vld [vmem:[#allocation5 + $0x50] sm:$0xff]
    %v1361 = vld [vmem:[#allocation5 + $0x58] sm:$0xff]
    %v1362 = vld [vmem:[#allocation5 + $0x60] sm:$0xff]
    %v1363 = vld [vmem:[#allocation5 + $0x68] sm:$0xff]
    %v1364 = vld [vmem:[#allocation5 + $0x70] sm:$0xff]
    %v1365 = vld [vmem:[#allocation5 + $0x78] sm:$0xff]
    %v1366 = vsub.f32 %v1318, %v1350
    %v1367 = vsub.f32 %v1319, %v1351
    %v1368 = vsub.f32 %v1320, %v1352
    %v1369 = vsub.f32 %v1321, %v1353
    %v1370 = vsub.f32 %v1322, %v1354
    %v1371 = vsub.f32 %v1323, %v1355
    %v1372 = vsub.f32 %v1324, %v1356
    %v1373 = vsub.f32 %v1325, %v1357
    %v1374 = vsub.f32 %v1326, %v1358
    %v1375 = vsub.f32 %v1327, %v1359
    %v1376 = vsub.f32 %v1328, %v1360
    %v1377 = vsub.f32 %v1329, %v1361
    %v1378 = vsub.f32 %v1330, %v1362
    %v1379 = vsub.f32 %v1331, %v1363
    %v1380 = vsub.f32 %v1332, %v1364
    %v1381 = vsub.f32 %v1333, %v1365
    %v1382 = vsub.f32 %v1334, %v1350
    %v1383 = vsub.f32 %v1335, %v1351
    %v1384 = vsub.f32 %v1336, %v1352
    %v1385 = vsub.f32 %v1337, %v1353
    %v1386 = vsub.f32 %v1338, %v1354
    %v1387 = vsub.f32 %v1339, %v1355
    %v1388 = vsub.f32 %v1340, %v1356
    %v1389 = vsub.f32 %v1341, %v1357
    %v1390 = vsub.f32 %v1342, %v1358
    %v1391 = vsub.f32 %v1343, %v1359
    %v1392 = vsub.f32 %v1344, %v1360
    %v1393 = vsub.f32 %v1345, %v1361
    %v1394 = vsub.f32 %v1346, %v1362
    %v1395 = vsub.f32 %v1347, %v1363
    %v1396 = vsub.f32 %v1348, %v1364
    %v1397 = vsub.f32 %v1349, %v1365
    %1398 = vst [vmem:[#allocation10] sm:$0xff] %v1366
    %1399 = vst [vmem:[#allocation10 + $0x8] sm:$0xff] %v1367
    %1400 = vst [vmem:[#allocation10 + $0x10] sm:$0xff] %v1368
    %1401 = vst [vmem:[#allocation10 + $0x18] sm:$0xff] %v1369
    %1402 = vst [vmem:[#allocation10 + $0x20] sm:$0xff] %v1370
    %1403 = vst [vmem:[#allocation10 + $0x28] sm:$0xff] %v1371
    %1404 = vst [vmem:[#allocation10 + $0x30] sm:$0xff] %v1372
    %1405 = vst [vmem:[#allocation10 + $0x38] sm:$0xff] %v1373
    %1406 = vst [vmem:[#allocation10 + $0x40] sm:$0xff] %v1374
    %1407 = vst [vmem:[#allocation10 + $0x48] sm:$0xff] %v1375
    %1408 = vst [vmem:[#allocation10 + $0x50] sm:$0xff] %v1376
    %1409 = vst [vmem:[#allocation10 + $0x58] sm:$0xff] %v1377
    %1410 = vst [vmem:[#allocation10 + $0x60] sm:$0xff] %v1378
    %1411 = vst [vmem:[#allocation10 + $0x68] sm:$0xff] %v1379
    %1412 = vst [vmem:[#allocation10 + $0x70] sm:$0xff] %v1380
    %1413 = vst [vmem:[#allocation10 + $0x78] sm:$0xff] %v1381
    %1414 = vst [vmem:[#allocation10 + $0x80] sm:$0xff] %v1382
    %1415 = vst [vmem:[#allocation10 + $0x88] sm:$0xff] %v1383
    %1416 = vst [vmem:[#allocation10 + $0x90] sm:$0xff] %v1384
    %1417 = vst [vmem:[#allocation10 + $0x98] sm:$0xff] %v1385
    %1418 = vst [vmem:[#allocation10 + $0xa0] sm:$0xff] %v1386
    %1419 = vst [vmem:[#allocation10 + $0xa8] sm:$0xff] %v1387
    %1420 = vst [vmem:[#allocation10 + $0xb0] sm:$0xff] %v1388
    %1421 = vst [vmem:[#allocation10 + $0xb8] sm:$0xff] %v1389
    %1422 = vst [vmem:[#allocation10 + $0xc0] sm:$0xff] %v1390
    %1423 = vst [vmem:[#allocation10 + $0xc8] sm:$0xff] %v1391
    %1424 = vst [vmem:[#allocation10 + $0xd0] sm:$0xff] %v1392
    %1425 = vst [vmem:[#allocation10 + $0xd8] sm:$0xff] %v1393
    %1426 = vst [vmem:[#allocation10 + $0xe0] sm:$0xff] %v1394
    %1427 = vst [vmem:[#allocation10 + $0xe8] sm:$0xff] %v1395
    %1428 = vst [vmem:[#allocation10 + $0xf0] sm:$0xff] %v1396
    %1429 = vst [vmem:[#allocation10 + $0xf8] sm:$0xff] %v1397
    %v1430 = vld [vmem:[#allocation2] sm:$0xff]
    %v1431 = vld [vmem:[#allocation2 + $0x8] sm:$0xff]
    %v1432 = vld [vmem:[#allocation2 + $0x10] sm:$0xff]
    %v1433 = vld [vmem:[#allocation2 + $0x18] sm:$0xff]
    %v1434 = vld [vmem:[#allocation2 + $0x20] sm:$0xff]
    %v1435 = vld [vmem:[#allocation2 + $0x28] sm:$0xff]
    %v1436 = vld [vmem:[#allocation2 + $0x30] sm:$0xff]
    %v1437 = vld [vmem:[#allocation2 + $0x38] sm:$0xff]
    %v1438 = vld [vmem:[#allocation2 + $0x40] sm:$0xff]
    %v1439 = vld [vmem:[#allocation2 + $0x48] sm:$0xff]
    %v1440 = vld [vmem:[#allocation2 + $0x50] sm:$0xff]
    %v1441 = vld [vmem:[#allocation2 + $0x58] sm:$0xff]
    %v1442 = vld [vmem:[#allocation2 + $0x60] sm:$0xff]
    %v1443 = vld [vmem:[#allocation2 + $0x68] sm:$0xff]
    %v1444 = vld [vmem:[#allocation2 + $0x70] sm:$0xff]
    %v1445 = vld [vmem:[#allocation2 + $0x78] sm:$0xff]
    %v1446 = vld [vmem:[#allocation2 + $0x80] sm:$0xff]
    %v1447 = vld [vmem:[#allocation2 + $0x88] sm:$0xff]
    %v1448 = vld [vmem:[#allocation2 + $0x90] sm:$0xff]
    %v1449 = vld [vmem:[#allocation2 + $0x98] sm:$0xff]
    %v1450 = vld [vmem:[#allocation2 + $0xa0] sm:$0xff]
    %v1451 = vld [vmem:[#allocation2 + $0xa8] sm:$0xff]
    %v1452 = vld [vmem:[#allocation2 + $0xb0] sm:$0xff]
    %v1453 = vld [vmem:[#allocation2 + $0xb8] sm:$0xff]
    %v1454 = vld [vmem:[#allocation2 + $0xc0] sm:$0xff]
    %v1455 = vld [vmem:[#allocation2 + $0xc8] sm:$0xff]
    %v1456 = vld [vmem:[#allocation2 + $0xd0] sm:$0xff]
    %v1457 = vld [vmem:[#allocation2 + $0xd8] sm:$0xff]
    %v1458 = vld [vmem:[#allocation2 + $0xe0] sm:$0xff]
    %v1459 = vld [vmem:[#allocation2 + $0xe8] sm:$0xff]
    %v1460 = vld [vmem:[#allocation2 + $0xf0] sm:$0xff]
    %v1461 = vld [vmem:[#allocation2 + $0xf8] sm:$0xff]
    %v1462 = vmul.f32 %v1430, 2.0
    %v1463 = vmul.f32 %v1431, 2.0
    %v1464 = vmul.f32 %v1432, 2.0
    %v1465 = vmul.f32 %v1433, 2.0
    %v1466 = vmul.f32 %v1434, 2.0
    %v1467 = vmul.f32 %v1435, 2.0
    %v1468 = vmul.f32 %v1436, 2.0
    %v1469 = vmul.f32 %v1437, 2.0
    %v1470 = vmul.f32 %v1438, 2.0
    %v1471 = vmul.f32 %v1439, 2.0
    %v1472 = vmul.f32 %v1440, 2.0
    %v1473 = vmul.f32 %v1441, 2.0
    %v1474 = vmul.f32 %v1442, 2.0
    %v1475 = vmul.f32 %v1443, 2.0
    %v1476 = vmul.f32 %v1444, 2.0
    %v1477 = vmul.f32 %v1445, 2.0
    %v1478 = vmul.f32 %v1446, 2.0
    %v1479 = vmul.f32 %v1447, 2.0
    %v1480 = vmul.f32 %v1448, 2.0
    %v1481 = vmul.f32 %v1449, 2.0
    %v1482 = vmul.f32 %v1450, 2.0
    %v1483 = vmul.f32 %v1451, 2.0
    %v1484 = vmul.f32 %v1452, 2.0
    %v1485 = vmul.f32 %v1453, 2.0
    %v1486 = vmul.f32 %v1454, 2.0
    %v1487 = vmul.f32 %v1455, 2.0
    %v1488 = vmul.f32 %v1456, 2.0
    %v1489 = vmul.f32 %v1457, 2.0
    %v1490 = vmul.f32 %v1458, 2.0
    %v1491 = vmul.f32 %v1459, 2.0
    %v1492 = vmul.f32 %v1460, 2.0
    %v1493 = vmul.f32 %v1461, 2.0
    %v1494 = vsub.f32 1.0, %v1462
    %v1495 = vsub.f32 1.0, %v1463
    %v1496 = vsub.f32 1.0, %v1464
    %v1497 = vsub.f32 1.0, %v1465
    %v1498 = vsub.f32 1.0, %v1466
    %v1499 = vsub.f32 1.0, %v1467
    %v1500 = vsub.f32 1.0, %v1468
    %v1501 = vsub.f32 1.0, %v1469
    %v1502 = vsub.f32 1.0, %v1470
    %v1503 = vsub.f32 1.0, %v1471
    %v1504 = vsub.f32 1.0, %v1472
    %v1505 = vsub.f32 1.0, %v1473
    %v1506 = vsub.f32 1.0, %v1474
    %v1507 = vsub.f32 1.0, %v1475
    %v1508 = vsub.f32 1.0, %v1476
    %v1509 = vsub.f32 1.0, %v1477
    %v1510 = vsub.f32 1.0, %v1478
    %v1511 = vsub.f32 1.0, %v1479
    %v1512 = vsub.f32 1.0, %v1480
    %v1513 = vsub.f32 1.0, %v1481
    %v1514 = vsub.f32 1.0, %v1482
    %v1515 = vsub.f32 1.0, %v1483
    %v1516 = vsub.f32 1.0, %v1484
    %v1517 = vsub.f32 1.0, %v1485
    %v1518 = vsub.f32 1.0, %v1486
    %v1519 = vsub.f32 1.0, %v1487
    %v1520 = vsub.f32 1.0, %v1488
    %v1521 = vsub.f32 1.0, %v1489
    %v1522 = vsub.f32 1.0, %v1490
    %v1523 = vsub.f32 1.0, %v1491
    %v1524 = vsub.f32 1.0, %v1492
    %v1525 = vsub.f32 1.0, %v1493
    %v1526 = vmul.f32 %v1494, %v1366
    %v1527 = vmul.f32 %v1495, %v1367
    %v1528 = vmul.f32 %v1496, %v1368
    %v1529 = vmul.f32 %v1497, %v1369
    %v1530 = vmul.f32 %v1498, %v1370
    %v1531 = vmul.f32 %v1499, %v1371
    %v1532 = vmul.f32 %v1500, %v1372
    %v1533 = vmul.f32 %v1501, %v1373
    %v1534 = vmul.f32 %v1502, %v1374
    %v1535 = vmul.f32 %v1503, %v1375
    %v1536 = vmul.f32 %v1504, %v1376
    %v1537 = vmul.f32 %v1505, %v1377
    %v1538 = vmul.f32 %v1506, %v1378
    %v1539 = vmul.f32 %v1507, %v1379
    %v1540 = vmul.f32 %v1508, %v1380
    %v1541 = vmul.f32 %v1509, %v1381
    %v1542 = vmul.f32 %v1510, %v1382
    %v1543 = vmul.f32 %v1511, %v1383
    %v1544 = vmul.f32 %v1512, %v1384
    %v1545 = vmul.f32 %v1513, %v1385
    %v1546 = vmul.f32 %v1514, %v1386
    %v1547 = vmul.f32 %v1515, %v1387
    %v1548 = vmul.f32 %v1516, %v1388
    %v1549 = vmul.f32 %v1517, %v1389
    %v1550 = vmul.f32 %v1518, %v1390
    %v1551 = vmul.f32 %v1519, %v1391
    %v1552 = vmul.f32 %v1520, %v1392
    %v1553 = vmul.f32 %v1521, %v1393
    %v1554 = vmul.f32 %v1522, %v1394
    %v1555 = vmul.f32 %v1523, %v1395
    %v1556 = vmul.f32 %v1524, %v1396
    %v1557 = vmul.f32 %v1525, %v1397
    %v1558 = vmul.f32 %v1430, 1e+12
    %v1559 = vmul.f32 %v1431, 1e+12
    %v1560 = vmul.f32 %v1432, 1e+12
    %v1561 = vmul.f32 %v1433, 1e+12
    %v1562 = vmul.f32 %v1434, 1e+12
    %v1563 = vmul.f32 %v1435, 1e+12
    %v1564 = vmul.f32 %v1436, 1e+12
    %v1565 = vmul.f32 %v1437, 1e+12
    %v1566 = vmul.f32 %v1438, 1e+12
    %v1567 = vmul.f32 %v1439, 1e+12
    %v1568 = vmul.f32 %v1440, 1e+12
    %v1569 = vmul.f32 %v1441, 1e+12
    %v1570 = vmul.f32 %v1442, 1e+12
    %v1571 = vmul.f32 %v1443, 1e+12
    %v1572 = vmul.f32 %v1444, 1e+12
    %v1573 = vmul.f32 %v1445, 1e+12
    %v1574 = vmul.f32 %v1446, 1e+12
    %v1575 = vmul.f32 %v1447, 1e+12
    %v1576 = vmul.f32 %v1448, 1e+12
    %v1577 = vmul.f32 %v1449, 1e+12
    %v1578 = vmul.f32 %v1450, 1e+12
    %v1579 = vmul.f32 %v1451, 1e+12
    %v1580 = vmul.f32 %v1452, 1e+12
    %v1581 = vmul.f32 %v1453, 1e+12
    %v1582 = vmul.f32 %v1454, 1e+12
    %v1583 = vmul.f32 %v1455, 1e+12
    %v1584 = vmul.f32 %v1456, 1e+12
    %v1585 = vmul.f32 %v1457, 1e+12
    %v1586 = vmul.f32 %v1458, 1e+12
    %v1587 = vmul.f32 %v1459, 1e+12
    %v1588 = vmul.f32 %v1460, 1e+12
    %v1589 = vmul.f32 %v1461, 1e+12
    %v1590 = vsub.f32 %v1526, %v1558
    %v1591 = vsub.f32 %v1527, %v1559
    %v1592 = vsub.f32 %v1528, %v1560
    %v1593 = vsub.f32 %v1529, %v1561
    %v1594 = vsub.f32 %v1530, %v1562
    %v1595 = vsub.f32 %v1531, %v1563
    %v1596 = vsub.f32 %v1532, %v1564
    %v1597 = vsub.f32 %v1533, %v1565
    %v1598 = vsub.f32 %v1534, %v1566
    %v1599 = vsub.f32 %v1535, %v1567
    %v1600 = vsub.f32 %v1536, %v1568
    %v1601 = vsub.f32 %v1537, %v1569
    %v1602 = vsub.f32 %v1538, %v1570
    %v1603 = vsub.f32 %v1539, %v1571
    %v1604 = vsub.f32 %v1540, %v1572
    %v1605 = vsub.f32 %v1541, %v1573
    %v1606 = vsub.f32 %v1542, %v1574
    %v1607 = vsub.f32 %v1543, %v1575
    %v1608 = vsub.f32 %v1544, %v1576
    %v1609 = vsub.f32 %v1545, %v1577
    %v1610 = vsub.f32 %v1546, %v1578
    %v1611 = vsub.f32 %v1547, %v1579
    %v1612 = vsub.f32 %v1548, %v1580
    %v1613 = vsub.f32 %v1549, %v1581
    %v1614 = vsub.f32 %v1550, %v1582
    %v1615 = vsub.f32 %v1551, %v1583
    %v1616 = vsub.f32 %v1552, %v1584
    %v1617 = vsub.f32 %v1553, %v1585
    %v1618 = vsub.f32 %v1554, %v1586
    %v1619 = vsub.f32 %v1555, %v1587
    %v1620 = vsub.f32 %v1556, %v1588
    %v1621 = vsub.f32 %v1557, %v1589
    %1622 = vmax.xlane.f32.xlu0 %v1590
    %v1623 = vpop.xlane.xlu0 %1622
    %1624 = vmax.xlane.f32.xlu0 %v1591
    %v1625 = vpop.xlane.xlu0 %1624
    %1626 = vmax.xlane.f32.xlu0 %v1592
    %v1627 = vpop.xlane.xlu0 %1626
    %1628 = vmax.xlane.f32.xlu0 %v1593
    %v1629 = vpop.xlane.xlu0 %1628
    %1630 = vmax.xlane.f32.xlu0 %v1594
    %v1631 = vpop.xlane.xlu0 %1630
    %1632 = vmax.xlane.f32.xlu0 %v1595
    %v1633 = vpop.xlane.xlu0 %1632
    %1634 = vmax.xlane.f32.xlu0 %v1596
    %v1635 = vpop.xlane.xlu0 %1634
    %1636 = vmax.xlane.f32.xlu0 %v1597
    %v1637 = vpop.xlane.xlu0 %1636
    %1638 = vmax.xlane.f32.xlu0 %v1598
    %v1639 = vpop.xlane.xlu0 %1638
    %1640 = vmax.xlane.f32.xlu0 %v1599
    %v1641 = vpop.xlane.xlu0 %1640
    %1642 = vmax.xlane.f32.xlu0 %v1600
    %v1643 = vpop.xlane.xlu0 %1642
    %1644 = vmax.xlane.f32.xlu0 %v1601
    %v1645 = vpop.xlane.xlu0 %1644
    %1646 = vmax.xlane.f32.xlu0 %v1602
    %v1647 = vpop.xlane.xlu0 %1646
    %1648 = vmax.xlane.f32.xlu0 %v1603
    %v1649 = vpop.xlane.xlu0 %1648
    %1650 = vmax.xlane.f32.xlu0 %v1604
    %v1651 = vpop.xlane.xlu0 %1650
    %1652 = vmax.xlane.f32.xlu0 %v1605
    %v1653 = vpop.xlane.xlu0 %1652
    %1654 = vmax.xlane.f32.xlu0 %v1606
    %v1655 = vpop.xlane.xlu0 %1654
    %1656 = vmax.xlane.f32.xlu0 %v1607
    %v1657 = vpop.xlane.xlu0 %1656
    %1658 = vmax.xlane.f32.xlu0 %v1608
    %v1659 = vpop.xlane.xlu0 %1658
    %1660 = vmax.xlane.f32.xlu0 %v1609
    %v1661 = vpop.xlane.xlu0 %1660
    %1662 = vmax.xlane.f32.xlu0 %v1610
    %v1663 = vpop.xlane.xlu0 %1662
    %1664 = vmax.xlane.f32.xlu0 %v1611
    %v1665 = vpop.xlane.xlu0 %1664
    %1666 = vmax.xlane.f32.xlu0 %v1612
    %v1667 = vpop.xlane.xlu0 %1666
    %1668 = vmax.xlane.f32.xlu0 %v1613
    %v1669 = vpop.xlane.xlu0 %1668
    %1670 = vmax.xlane.f32.xlu0 %v1614
    %v1671 = vpop.xlane.xlu0 %1670
    %1672 = vmax.xlane.f32.xlu0 %v1615
    %v1673 = vpop.xlane.xlu0 %1672
    %1674 = vmax.xlane.f32.xlu0 %v1616
    %v1675 = vpop.xlane.xlu0 %1674
    %1676 = vmax.xlane.f32.xlu0 %v1617
    %v1677 = vpop.xlane.xlu0 %1676
    %1678 = vmax.xlane.f32.xlu0 %v1618
    %v1679 = vpop.xlane.xlu0 %1678
    %1680 = vmax.xlane.f32.xlu0 %v1619
    %v1681 = vpop.xlane.xlu0 %1680
    %1682 = vmax.xlane.f32.xlu0 %v1620
    %v1683 = vpop.xlane.xlu0 %1682
    %1684 = vmax.xlane.f32.xlu0 %v1621
    %v1685 = vpop.xlane.xlu0 %1684
    %v1686 = vmax.f32 %v1623, %v1627
    %v1687 = vmax.f32 %v1625, %v1629
    %v1688 = vmax.f32 %v1686, %v1631
    %v1689 = vmax.f32 %v1687, %v1633
    %v1690 = vmax.f32 %v1688, %v1635
    %v1691 = vmax.f32 %v1689, %v1637
    %v1692 = vmax.f32 %v1690, %v1639
    %v1693 = vmax.f32 %v1691, %v1641
    %v1694 = vmax.f32 %v1692, %v1643
    %v1695 = vmax.f32 %v1693, %v1645
    %v1696 = vmax.f32 %v1694, %v1647
    %v1697 = vmax.f32 %v1695, %v1649
    %v1698 = vmax.f32 %v1696, %v1651
    %v1699 = vmax.f32 %v1697, %v1653
    %v1700 = vmax.f32 %v1698, %v1699
    %v1701 = vrot.slane %v1700, 4
    %v1702 = vmax.f32 %v1700, %v1701
    %v1703 = vrot.slane %v1702, 2
    %v1704 = vmax.f32 %v1702, %v1703
    %v1705 = vrot.slane %v1704, 1
    %v1706 = vmax.f32 %v1704, %v1705
    %v1707 = vmax.f32 %v1655, %v1659
    %v1708 = vmax.f32 %v1657, %v1661
    %v1709 = vmax.f32 %v1707, %v1663
    %v1710 = vmax.f32 %v1708, %v1665
    %v1711 = vmax.f32 %v1709, %v1667
    %v1712 = vmax.f32 %v1710, %v1669
    %v1713 = vmax.f32 %v1711, %v1671
    %v1714 = vmax.f32 %v1712, %v1673
    %v1715 = vmax.f32 %v1713, %v1675
    %v1716 = vmax.f32 %v1714, %v1677
    %v1717 = vmax.f32 %v1715, %v1679
    %v1718 = vmax.f32 %v1716, %v1681
    %v1719 = vmax.f32 %v1717, %v1683
    %v1720 = vmax.f32 %v1718, %v1685
    %v1721 = vmax.f32 %v1719, %v1720
    %v1722 = vrot.slane %v1721, 4
    %v1723 = vmax.f32 %v1721, %v1722
    %v1724 = vrot.slane %v1723, 2
    %v1725 = vmax.f32 %v1723, %v1724
    %v1726 = vrot.slane %v1725, 1
    %v1727 = vmax.f32 %v1725, %v1726
    %v1728 = vmax.f32 %v1706, 0.0
    %v1729 = vmax.f32 %v1727, 0.0
    %v1730 = vsub.f32 %v1590, %v1728
    %v1731 = vsub.f32 %v1591, %v1728
    %v1732 = vsub.f32 %v1592, %v1728
    %v1733 = vsub.f32 %v1593, %v1728
    %v1734 = vsub.f32 %v1594, %v1728
    %v1735 = vsub.f32 %v1595, %v1728
    %v1736 = vsub.f32 %v1596, %v1728
    %v1737 = vsub.f32 %v1597, %v1728
    %v1738 = vsub.f32 %v1598, %v1728
    %v1739 = vsub.f32 %v1599, %v1728
    %v1740 = vsub.f32 %v1600, %v1728
    %v1741 = vsub.f32 %v1601, %v1728
    %v1742 = vsub.f32 %v1602, %v1728
    %v1743 = vsub.f32 %v1603, %v1728
    %v1744 = vsub.f32 %v1604, %v1728
    %v1745 = vsub.f32 %v1605, %v1728
    %v1746 = vsub.f32 %v1606, %v1729
    %v1747 = vsub.f32 %v1607, %v1729
    %v1748 = vsub.f32 %v1608, %v1729
    %v1749 = vsub.f32 %v1609, %v1729
    %v1750 = vsub.f32 %v1610, %v1729
    %v1751 = vsub.f32 %v1611, %v1729
    %v1752 = vsub.f32 %v1612, %v1729
    %v1753 = vsub.f32 %v1613, %v1729
    %v1754 = vsub.f32 %v1614, %v1729
    %v1755 = vsub.f32 %v1615, %v1729
    %v1756 = vsub.f32 %v1616, %v1729
    %v1757 = vsub.f32 %v1617, %v1729
    %v1758 = vsub.f32 %v1618, %v1729
    %v1759 = vsub.f32 %v1619, %v1729
    %v1760 = vsub.f32 %v1620, %v1729
    %v1761 = vsub.f32 %v1621, %v1729
    %v1762 = vmul.f32 %v1730, 1.442695
    %v1763 = vpow.pop %v1762
    %v1764 = vmul.f32 %v1731, 1.442695
    %v1765 = vpow.pop %v1764
    %v1766 = vmul.f32 %v1732, 1.442695
    %v1767 = vpow.pop %v1766
    %v1768 = vmul.f32 %v1733, 1.442695
    %v1769 = vpow.pop %v1768
    %v1770 = vmul.f32 %v1734, 1.442695
    %v1771 = vpow.pop %v1770
    %v1772 = vmul.f32 %v1735, 1.442695
    %v1773 = vpow.pop %v1772
    %v1774 = vmul.f32 %v1736, 1.442695
    %v1775 = vpow.pop %v1774
    %v1776 = vmul.f32 %v1737, 1.442695
    %v1777 = vpow.pop %v1776
    %v1778 = vmul.f32 %v1738, 1.442695
    %v1779 = vpow.pop %v1778
    %v1780 = vmul.f32 %v1739, 1.442695
    %v1781 = vpow.pop %v1780
    %v1782 = vmul.f32 %v1740, 1.442695
    %v1783 = vpow.pop %v1782
    %v1784 = vmul.f32 %v1741, 1.442695
    %v1785 = vpow.pop %v1784
    %v1786 = vmul.f32 %v1742, 1.442695
    %v1787 = vpow.pop %v1786
    %v1788 = vmul.f32 %v1743, 1.442695
    %v1789 = vpow.pop %v1788
    %v1790 = vmul.f32 %v1744, 1.442695
    %v1791 = vpow.pop %v1790
    %v1792 = vmul.f32 %v1745, 1.442695
    %v1793 = vpow.pop %v1792
    %v1794 = vmul.f32 %v1746, 1.442695
    %v1795 = vpow.pop %v1794
    %v1796 = vmul.f32 %v1747, 1.442695
    %v1797 = vpow.pop %v1796
    %v1798 = vmul.f32 %v1748, 1.442695
    %v1799 = vpow.pop %v1798
    %v1800 = vmul.f32 %v1749, 1.442695
    %v1801 = vpow.pop %v1800
    %v1802 = vmul.f32 %v1750, 1.442695
    %v1803 = vpow.pop %v1802
    %v1804 = vmul.f32 %v1751, 1.442695
    %v1805 = vpow.pop %v1804
    %v1806 = vmul.f32 %v1752, 1.442695
    %v1807 = vpow.pop %v1806
    %v1808 = vmul.f32 %v1753, 1.442695
    %v1809 = vpow.pop %v1808
    %v1810 = vmul.f32 %v1754, 1.442695
    %v1811 = vpow.pop %v1810
    %v1812 = vmul.f32 %v1755, 1.442695
    %v1813 = vpow.pop %v1812
    %v1814 = vmul.f32 %v1756, 1.442695
    %v1815 = vpow.pop %v1814
    %v1816 = vmul.f32 %v1757, 1.442695
    %v1817 = vpow.pop %v1816
    %v1818 = vmul.f32 %v1758, 1.442695
    %v1819 = vpow.pop %v1818
    %v1820 = vmul.f32 %v1759, 1.442695
    %v1821 = vpow.pop %v1820
    %v1822 = vmul.f32 %v1760, 1.442695
    %v1823 = vpow.pop %v1822
    %v1824 = vmul.f32 %v1761, 1.442695
    %v1825 = vpow.pop %v1824
    %1826 = vadd.xlane.f32.xlu0 %v1763
    %v1827 = vpop.xlane.xlu0 %1826
    %1828 = vadd.xlane.f32.xlu0 %v1765
    %v1829 = vpop.xlane.xlu0 %1828
    %1830 = vadd.xlane.f32.xlu0 %v1767
    %v1831 = vpop.xlane.xlu0 %1830
    %1832 = vadd.xlane.f32.xlu0 %v1769
    %v1833 = vpop.xlane.xlu0 %1832
    %1834 = vadd.xlane.f32.xlu0 %v1771
    %v1835 = vpop.xlane.xlu0 %1834
    %1836 = vadd.xlane.f32.xlu0 %v1773
    %v1837 = vpop.xlane.xlu0 %1836
    %1838 = vadd.xlane.f32.xlu0 %v1775
    %v1839 = vpop.xlane.xlu0 %1838
    %1840 = vadd.xlane.f32.xlu0 %v1777
    %v1841 = vpop.xlane.xlu0 %1840
    %1842 = vadd.xlane.f32.xlu0 %v1779
    %v1843 = vpop.xlane.xlu0 %1842
    %1844 = vadd.xlane.f32.xlu0 %v1781
    %v1845 = vpop.xlane.xlu0 %1844
    %1846 = vadd.xlane.f32.xlu0 %v1783
    %v1847 = vpop.xlane.xlu0 %1846
    %1848 = vadd.xlane.f32.xlu0 %v1785
    %v1849 = vpop.xlane.xlu0 %1848
    %1850 = vadd.xlane.f32.xlu0 %v1787
    %v1851 = vpop.xlane.xlu0 %1850
    %1852 = vadd.xlane.f32.xlu0 %v1789
    %v1853 = vpop.xlane.xlu0 %1852
    %1854 = vadd.xlane.f32.xlu0 %v1791
    %v1855 = vpop.xlane.xlu0 %1854
    %1856 = vadd.xlane.f32.xlu0 %v1793
    %v1857 = vpop.xlane.xlu0 %1856
    %1858 = vadd.xlane.f32.xlu0 %v1795
    %v1859 = vpop.xlane.xlu0 %1858
    %1860 = vadd.xlane.f32.xlu0 %v1797
    %v1861 = vpop.xlane.xlu0 %1860
    %1862 = vadd.xlane.f32.xlu0 %v1799
    %v1863 = vpop.xlane.xlu0 %1862
    %1864 = vadd.xlane.f32.xlu0 %v1801
    %v1865 = vpop.xlane.xlu0 %1864
    %1866 = vadd.xlane.f32.xlu0 %v1803
    %v1867 = vpop.xlane.xlu0 %1866
    %1868 = vadd.xlane.f32.xlu0 %v1805
    %v1869 = vpop.xlane.xlu0 %1868
    %1870 = vadd.xlane.f32.xlu0 %v1807
    %v1871 = vpop.xlane.xlu0 %1870
    %1872 = vadd.xlane.f32.xlu0 %v1809
    %v1873 = vpop.xlane.xlu0 %1872
    %1874 = vadd.xlane.f32.xlu0 %v1811
    %v1875 = vpop.xlane.xlu0 %1874
    %1876 = vadd.xlane.f32.xlu0 %v1813
    %v1877 = vpop.xlane.xlu0 %1876
    %1878 = vadd.xlane.f32.xlu0 %v1815
    %v1879 = vpop.xlane.xlu0 %1878
    %1880 = vadd.xlane.f32.xlu0 %v1817
    %v1881 = vpop.xlane.xlu0 %1880
    %1882 = vadd.xlane.f32.xlu0 %v1819
    %v1883 = vpop.xlane.xlu0 %1882
    %1884 = vadd.xlane.f32.xlu0 %v1821
    %v1885 = vpop.xlane.xlu0 %1884
    %1886 = vadd.xlane.f32.xlu0 %v1823
    %v1887 = vpop.xlane.xlu0 %1886
    %1888 = vadd.xlane.f32.xlu0 %v1825
    %v1889 = vpop.xlane.xlu0 %1888
    %v1890 = vadd.f32 %v1827, %v1829
    %v1891 = vadd.f32 %v1890, %v1831
    %v1892 = vadd.f32 %v1891, %v1833
    %v1893 = vadd.f32 %v1892, %v1835
    %v1894 = vadd.f32 %v1893, %v1837
    %v1895 = vadd.f32 %v1894, %v1839
    %v1896 = vadd.f32 %v1895, %v1841
    %v1897 = vadd.f32 %v1896, %v1843
    %v1898 = vadd.f32 %v1897, %v1845
    %v1899 = vadd.f32 %v1898, %v1847
    %v1900 = vadd.f32 %v1899, %v1849
    %v1901 = vadd.f32 %v1900, %v1851
    %v1902 = vadd.f32 %v1901, %v1853
    %v1903 = vadd.f32 %v1902, %v1855
    %v1904 = vadd.f32 %v1903, %v1857
    %v1905 = vrot.slane %v1904, 4
    %v1906 = vadd.f32 %v1904, %v1905
    %v1907 = vrot.slane %v1906, 2
    %v1908 = vadd.f32 %v1906, %v1907
    %v1909 = vrot.slane %v1908, 1
    %v1910 = vadd.f32 %v1908, %v1909
    %v1911 = vadd.f32 %v1859, %v1861
    %v1912 = vadd.f32 %v1911, %v1863
    %v1913 = vadd.f32 %v1912, %v1865
    %v1914 = vadd.f32 %v1913, %v1867
    %v1915 = vadd.f32 %v1914, %v1869
    %v1916 = vadd.f32 %v1915, %v1871
    %v1917 = vadd.f32 %v1916, %v1873
    %v1918 = vadd.f32 %v1917, %v1875
    %v1919 = vadd.f32 %v1918, %v1877
    %v1920 = vadd.f32 %v1919, %v1879
    %v1921 = vadd.f32 %v1920, %v1881
    %v1922 = vadd.f32 %v1921, %v1883
    %v1923 = vadd.f32 %v1922, %v1885
    %v1924 = vadd.f32 %v1923, %v1887
    %v1925 = vadd.f32 %v1924, %v1889
    %v1926 = vrot.slane %v1925, 4
    %v1927 = vadd.f32 %v1925, %v1926
    %v1928 = vrot.slane %v1927, 2
    %v1929 = vadd.f32 %v1927, %v1928
    %v1930 = vrot.slane %v1929, 1
    %v1931 = vadd.f32 %v1929, %v1930
    %v1932 = vsub.f32 0.0, %v1728
    %v1933 = vsub.f32 0.0, %v1729
    %v1934 = vmul.f32 %v1932, 1.442695
    %v1935 = vpow.pop %v1934
    %v1936 = vmul.f32 %v1933, 1.442695
    %v1937 = vpow.pop %v1936
    %v1938 = vadd.f32 %v1910, %v1935
    %v1939 = vadd.f32 %v1931, %v1937
    %v1940 = vlog2.pop %v1938
    %v1941 = vmul.f32 %v1940, 0.6931472
    %v1942 = vlog2.pop %v1939
    %v1943 = vmul.f32 %v1942, 0.6931472
    %v1944 = vadd.f32 %v1728, %v1941
    %v1945 = vadd.f32 %v1729, %v1943
    %v1946 = vsub.f32 1.0, %v1430
    %v1947 = vsub.f32 1.0, %v1431
    %v1948 = vsub.f32 1.0, %v1432
    %v1949 = vsub.f32 1.0, %v1433
    %v1950 = vsub.f32 1.0, %v1434
    %v1951 = vsub.f32 1.0, %v1435
    %v1952 = vsub.f32 1.0, %v1436
    %v1953 = vsub.f32 1.0, %v1437
    %v1954 = vsub.f32 1.0, %v1438
    %v1955 = vsub.f32 1.0, %v1439
    %v1956 = vsub.f32 1.0, %v1440
    %v1957 = vsub.f32 1.0, %v1441
    %v1958 = vsub.f32 1.0, %v1442
    %v1959 = vsub.f32 1.0, %v1443
    %v1960 = vsub.f32 1.0, %v1444
    %v1961 = vsub.f32 1.0, %v1445
    %v1962 = vsub.f32 1.0, %v1446
    %v1963 = vsub.f32 1.0, %v1447
    %v1964 = vsub.f32 1.0, %v1448
    %v1965 = vsub.f32 1.0, %v1449
    %v1966 = vsub.f32 1.0, %v1450
    %v1967 = vsub.f32 1.0, %v1451
    %v1968 = vsub.f32 1.0, %v1452
    %v1969 = vsub.f32 1.0, %v1453
    %v1970 = vsub.f32 1.0, %v1454
    %v1971 = vsub.f32 1.0, %v1455
    %v1972 = vsub.f32 1.0, %v1456
    %v1973 = vsub.f32 1.0, %v1457
    %v1974 = vsub.f32 1.0, %v1458
    %v1975 = vsub.f32 1.0, %v1459
    %v1976 = vsub.f32 1.0, %v1460
    %v1977 = vsub.f32 1.0, %v1461
    %v1978 = vmul.f32 %v1946, 1e+12
    %v1979 = vmul.f32 %v1947, 1e+12
    %v1980 = vmul.f32 %v1948, 1e+12
    %v1981 = vmul.f32 %v1949, 1e+12
    %v1982 = vmul.f32 %v1950, 1e+12
    %v1983 = vmul.f32 %v1951, 1e+12
    %v1984 = vmul.f32 %v1952, 1e+12
    %v1985 = vmul.f32 %v1953, 1e+12
    %v1986 = vmul.f32 %v1954, 1e+12
    %v1987 = vmul.f32 %v1955, 1e+12
    %v1988 = vmul.f32 %v1956, 1e+12
    %v1989 = vmul.f32 %v1957, 1e+12
    %v1990 = vmul.f32 %v1958, 1e+12
    %v1991 = vmul.f32 %v1959, 1e+12
    %v1992 = vmul.f32 %v1960, 1e+12
    %v1993 = vmul.f32 %v1961, 1e+12
    %v1994 = vmul.f32 %v1962, 1e+12
    %v1995 = vmul.f32 %v1963, 1e+12
    %v1996 = vmul.f32 %v1964, 1e+12
    %v1997 = vmul.f32 %v1965, 1e+12
    %v1998 = vmul.f32 %v1966, 1e+12
    %v1999 = vmul.f32 %v1967, 1e+12
    %v2000 = vmul.f32 %v1968, 1e+12
    %v2001 = vmul.f32 %v1969, 1e+12
    %v2002 = vmul.f32 %v1970, 1e+12
    %v2003 = vmul.f32 %v1971, 1e+12
    %v2004 = vmul.f32 %v1972, 1e+12
    %v2005 = vmul.f32 %v1973, 1e+12
    %v2006 = vmul.f32 %v1974, 1e+12
    %v2007 = vmul.f32 %v1975, 1e+12
    %v2008 = vmul.f32 %v1976, 1e+12
    %v2009 = vmul.f32 %v1977, 1e+12
    %v2010 = vsub.f32 %v1526, %v1978
    %v2011 = vsub.f32 %v1527, %v1979
    %v2012 = vsub.f32 %v1528, %v1980
    %v2013 = vsub.f32 %v1529, %v1981
    %v2014 = vsub.f32 %v1530, %v1982
    %v2015 = vsub.f32 %v1531, %v1983
    %v2016 = vsub.f32 %v1532, %v1984
    %v2017 = vsub.f32 %v1533, %v1985
    %v2018 = vsub.f32 %v1534, %v1986
    %v2019 = vsub.f32 %v1535, %v1987
    %v2020 = vsub.f32 %v1536, %v1988
    %v2021 = vsub.f32 %v1537, %v1989
    %v2022 = vsub.f32 %v1538, %v1990
    %v2023 = vsub.f32 %v1539, %v1991
    %v2024 = vsub.f32 %v1540, %v1992
    %v2025 = vsub.f32 %v1541, %v1993
    %v2026 = vsub.f32 %v1542, %v1994
    %v2027 = vsub.f32 %v1543, %v1995
    %v2028 = vsub.f32 %v1544, %v1996
    %v2029 = vsub.f32 %v1545, %v1997
    %v2030 = vsub.f32 %v1546, %v1998
    %v2031 = vsub.f32 %v1547, %v1999
    %v2032 = vsub.f32 %v1548, %v2000
    %v2033 = vsub.f32 %v1549, %v2001
    %v2034 = vsub.f32 %v1550, %v2002
    %v2035 = vsub.f32 %v1551, %v2003
    %v2036 = vsub.f32 %v1552, %v2004
    %v2037 = vsub.f32 %v1553, %v2005
    %v2038 = vsub.f32 %v1554, %v2006
    %v2039 = vsub.f32 %v1555, %v2007
    %v2040 = vsub.f32 %v1556, %v2008
    %v2041 = vsub.f32 %v1557, %v2009
    %2042 = vmax.xlane.f32.xlu0 %v2010
    %v2043 = vpop.xlane.xlu0 %2042
    %2044 = vmax.xlane.f32.xlu0 %v2011
    %v2045 = vpop.xlane.xlu0 %2044
    %2046 = vmax.xlane.f32.xlu0 %v2012
    %v2047 = vpop.xlane.xlu0 %2046
    %2048 = vmax.xlane.f32.xlu0 %v2013
    %v2049 = vpop.xlane.xlu0 %2048
    %2050 = vmax.xlane.f32.xlu0 %v2014
    %v2051 = vpop.xlane.xlu0 %2050
    %2052 = vmax.xlane.f32.xlu0 %v2015
    %v2053 = vpop.xlane.xlu0 %2052
    %2054 = vmax.xlane.f32.xlu0 %v2016
    %v2055 = vpop.xlane.xlu0 %2054
    %2056 = vmax.xlane.f32.xlu0 %v2017
    %v2057 = vpop.xlane.xlu0 %2056
    %2058 = vmax.xlane.f32.xlu0 %v2018
    %v2059 = vpop.xlane.xlu0 %2058
    %2060 = vmax.xlane.f32.xlu0 %v2019
    %v2061 = vpop.xlane.xlu0 %2060
    %2062 = vmax.xlane.f32.xlu0 %v2020
    %v2063 = vpop.xlane.xlu0 %2062
    %2064 = vmax.xlane.f32.xlu0 %v2021
    %v2065 = vpop.xlane.xlu0 %2064
    %2066 = vmax.xlane.f32.xlu0 %v2022
    %v2067 = vpop.xlane.xlu0 %2066
    %2068 = vmax.xlane.f32.xlu0 %v2023
    %v2069 = vpop.xlane.xlu0 %2068
    %2070 = vmax.xlane.f32.xlu0 %v2024
    %v2071 = vpop.xlane.xlu0 %2070
    %2072 = vmax.xlane.f32.xlu0 %v2025
    %v2073 = vpop.xlane.xlu0 %2072
    %2074 = vmax.xlane.f32.xlu0 %v2026
    %v2075 = vpop.xlane.xlu0 %2074
    %2076 = vmax.xlane.f32.xlu0 %v2027
    %v2077 = vpop.xlane.xlu0 %2076
    %2078 = vmax.xlane.f32.xlu0 %v2028
    %v2079 = vpop.xlane.xlu0 %2078
    %2080 = vmax.xlane.f32.xlu0 %v2029
    %v2081 = vpop.xlane.xlu0 %2080
    %2082 = vmax.xlane.f32.xlu0 %v2030
    %v2083 = vpop.xlane.xlu0 %2082
    %2084 = vmax.xlane.f32.xlu0 %v2031
    %v2085 = vpop.xlane.xlu0 %2084
    %2086 = vmax.xlane.f32.xlu0 %v2032
    %v2087 = vpop.xlane.xlu0 %2086
    %2088 = vmax.xlane.f32.xlu0 %v2033
    %v2089 = vpop.xlane.xlu0 %2088
    %2090 = vmax.xlane.f32.xlu0 %v2034
    %v2091 = vpop.xlane.xlu0 %2090
    %2092 = vmax.xlane.f32.xlu0 %v2035
    %v2093 = vpop.xlane.xlu0 %2092
    %2094 = vmax.xlane.f32.xlu0 %v2036
    %v2095 = vpop.xlane.xlu0 %2094
    %2096 = vmax.xlane.f32.xlu0 %v2037
    %v2097 = vpop.xlane.xlu0 %2096
    %2098 = vmax.xlane.f32.xlu0 %v2038
    %v2099 = vpop.xlane.xlu0 %2098
    %2100 = vmax.xlane.f32.xlu0 %v2039
    %v2101 = vpop.xlane.xlu0 %2100
    %2102 = vmax.xlane.f32.xlu0 %v2040
    %v2103 = vpop.xlane.xlu0 %2102
    %2104 = vmax.xlane.f32.xlu0 %v2041
    %v2105 = vpop.xlane.xlu0 %2104
    %v2106 = vmax.f32 %v2043, %v2047
    %v2107 = vmax.f32 %v2045, %v2049
    %v2108 = vmax.f32 %v2106, %v2051
    %v2109 = vmax.f32 %v2107, %v2053
    %v2110 = vmax.f32 %v2108, %v2055
    %v2111 = vmax.f32 %v2109, %v2057
    %v2112 = vmax.f32 %v2110, %v2059
    %v2113 = vmax.f32 %v2111, %v2061
    %v2114 = vmax.f32 %v2112, %v2063
    %v2115 = vmax.f32 %v2113, %v2065
    %v2116 = vmax.f32 %v2114, %v2067
    %v2117 = vmax.f32 %v2115, %v2069
    %v2118 = vmax.f32 %v2116, %v2071
    %v2119 = vmax.f32 %v2117, %v2073
    %v2120 = vmax.f32 %v2118, %v2119
    %v2121 = vrot.slane %v2120, 4
    %v2122 = vmax.f32 %v2120, %v2121
    %v2123 = vrot.slane %v2122, 2
    %v2124 = vmax.f32 %v2122, %v2123
    %v2125 = vrot.slane %v2124, 1
    %v2126 = vmax.f32 %v2124, %v2125
    %v2127 = vmax.f32 %v2075, %v2079
    %v2128 = vmax.f32 %v2077, %v2081
    %v2129 = vmax.f32 %v2127, %v2083
    %v2130 = vmax.f32 %v2128, %v2085
    %v2131 = vmax.f32 %v2129, %v2087
    %v2132 = vmax.f32 %v2130, %v2089
    %v2133 = vmax.f32 %v2131, %v2091
    %v2134 = vmax.f32 %v2132, %v2093
    %v2135 = vmax.f32 %v2133, %v2095
    %v2136 = vmax.f32 %v2134, %v2097
    %v2137 = vmax.f32 %v2135, %v2099
    %v2138 = vmax.f32 %v2136, %v2101
    %v2139 = vmax.f32 %v2137, %v2103
    %v2140 = vmax.f32 %v2138, %v2105
    %v2141 = vmax.f32 %v2139, %v2140
    %v2142 = vrot.slane %v2141, 4
    %v2143 = vmax.f32 %v2141, %v2142
    %v2144 = vrot.slane %v2143, 2
    %v2145 = vmax.f32 %v2143, %v2144
    %v2146 = vrot.slane %v2145, 1
    %v2147 = vmax.f32 %v2145, %v2146
    %v2148 = vmax.f32 %v2126, 0.0
    %v2149 = vmax.f32 %v2147, 0.0
    %v2150 = vsub.f32 %v2010, %v2148
    %v2151 = vsub.f32 %v2011, %v2148
    %v2152 = vsub.f32 %v2012, %v2148
    %v2153 = vsub.f32 %v2013, %v2148
    %v2154 = vsub.f32 %v2014, %v2148
    %v2155 = vsub.f32 %v2015, %v2148
    %v2156 = vsub.f32 %v2016, %v2148
    %v2157 = vsub.f32 %v2017, %v2148
    %v2158 = vsub.f32 %v2018, %v2148
    %v2159 = vsub.f32 %v2019, %v2148
    %v2160 = vsub.f32 %v2020, %v2148
    %v2161 = vsub.f32 %v2021, %v2148
    %v2162 = vsub.f32 %v2022, %v2148
    %v2163 = vsub.f32 %v2023, %v2148
    %v2164 = vsub.f32 %v2024, %v2148
    %v2165 = vsub.f32 %v2025, %v2148
    %v2166 = vsub.f32 %v2026, %v2149
    %v2167 = vsub.f32 %v2027, %v2149
    %v2168 = vsub.f32 %v2028, %v2149
    %v2169 = vsub.f32 %v2029, %v2149
    %v2170 = vsub.f32 %v2030, %v2149
    %v2171 = vsub.f32 %v2031, %v2149
    %v2172 = vsub.f32 %v2032, %v2149
    %v2173 = vsub.f32 %v2033, %v2149
    %v2174 = vsub.f32 %v2034, %v2149
    %v2175 = vsub.f32 %v2035, %v2149
    %v2176 = vsub.f32 %v2036, %v2149
    %v2177 = vsub.f32 %v2037, %v2149
    %v2178 = vsub.f32 %v2038, %v2149
    %v2179 = vsub.f32 %v2039, %v2149
    %v2180 = vsub.f32 %v2040, %v2149
    %v2181 = vsub.f32 %v2041, %v2149
    %v2182 = vmul.f32 %v2150, 1.442695
    %v2183 = vpow.pop %v2182
    %v2184 = vmul.f32 %v2151, 1.442695
    %v2185 = vpow.pop %v2184
    %v2186 = vmul.f32 %v2152, 1.442695
    %v2187 = vpow.pop %v2186
    %v2188 = vmul.f32 %v2153, 1.442695
    %v2189 = vpow.pop %v2188
    %v2190 = vmul.f32 %v2154, 1.442695
    %v2191 = vpow.pop %v2190
    %v2192 = vmul.f32 %v2155, 1.442695
    %v2193 = vpow.pop %v2192
    %v2194 = vmul.f32 %v2156, 1.442695
    %v2195 = vpow.pop %v2194
    %v2196 = vmul.f32 %v2157, 1.442695
    %v2197 = vpow.pop %v2196
    %v2198 = vmul.f32 %v2158, 1.442695
    %v2199 = vpow.pop %v2198
    %v2200 = vmul.f32 %v2159, 1.442695
    %v2201 = vpow.pop %v2200
    %v2202 = vmul.f32 %v2160, 1.442695
    %v2203 = vpow.pop %v2202
    %v2204 = vmul.f32 %v2161, 1.442695
    %v2205 = vpow.pop %v2204
    %v2206 = vmul.f32 %v2162, 1.442695
    %v2207 = vpow.pop %v2206
    %v2208 = vmul.f32 %v2163, 1.442695
    %v2209 = vpow.pop %v2208
    %v2210 = vmul.f32 %v2164, 1.442695
    %v2211 = vpow.pop %v2210
    %v2212 = vmul.f32 %v2165, 1.442695
    %v2213 = vpow.pop %v2212
    %v2214 = vmul.f32 %v2166, 1.442695
    %v2215 = vpow.pop %v2214
    %v2216 = vmul.f32 %v2167, 1.442695
    %v2217 = vpow.pop %v2216
    %v2218 = vmul.f32 %v2168, 1.442695
    %v2219 = vpow.pop %v2218
    %v2220 = vmul.f32 %v2169, 1.442695
    %v2221 = vpow.pop %v2220
    %v2222 = vmul.f32 %v2170, 1.442695
    %v2223 = vpow.pop %v2222
    %v2224 = vmul.f32 %v2171, 1.442695
    %v2225 = vpow.pop %v2224
    %v2226 = vmul.f32 %v2172, 1.442695
    %v2227 = vpow.pop %v2226
    %v2228 = vmul.f32 %v2173, 1.442695
    %v2229 = vpow.pop %v2228
    %v2230 = vmul.f32 %v2174, 1.442695
    %v2231 = vpow.pop %v2230
    %v2232 = vmul.f32 %v2175, 1.442695
    %v2233 = vpow.pop %v2232
    %v2234 = vmul.f32 %v2176, 1.442695
    %v2235 = vpow.pop %v2234
    %v2236 = vmul.f32 %v2177, 1.442695
    %v2237 = vpow.pop %v2236
    %v2238 = vmul.f32 %v2178, 1.442695
    %v2239 = vpow.pop %v2238
    %v2240 = vmul.f32 %v2179, 1.442695
    %v2241 = vpow.pop %v2240
    %v2242 = vmul.f32 %v2180, 1.442695
    %v2243 = vpow.pop %v2242
    %v2244 = vmul.f32 %v2181, 1.442695
    %v2245 = vpow.pop %v2244
    %2246 = vadd.xlane.f32.xlu0 %v2183
    %v2247 = vpop.xlane.xlu0 %2246
    %2248 = vadd.xlane.f32.xlu0 %v2185
    %v2249 = vpop.xlane.xlu0 %2248
    %2250 = vadd.xlane.f32.xlu0 %v2187
    %v2251 = vpop.xlane.xlu0 %2250
    %2252 = vadd.xlane.f32.xlu0 %v2189
    %v2253 = vpop.xlane.xlu0 %2252
    %2254 = vadd.xlane.f32.xlu0 %v2191
    %v2255 = vpop.xlane.xlu0 %2254
    %2256 = vadd.xlane.f32.xlu0 %v2193
    %v2257 = vpop.xlane.xlu0 %2256
    %2258 = vadd.xlane.f32.xlu0 %v2195
    %v2259 = vpop.xlane.xlu0 %2258
    %2260 = vadd.xlane.f32.xlu0 %v2197
    %v2261 = vpop.xlane.xlu0 %2260
    %2262 = vadd.xlane.f32.xlu0 %v2199
    %v2263 = vpop.xlane.xlu0 %2262
    %2264 = vadd.xlane.f32.xlu0 %v2201
    %v2265 = vpop.xlane.xlu0 %2264
    %2266 = vadd.xlane.f32.xlu0 %v2203
    %v2267 = vpop.xlane.xlu0 %2266
    %2268 = vadd.xlane.f32.xlu0 %v2205
    %v2269 = vpop.xlane.xlu0 %2268
    %2270 = vadd.xlane.f32.xlu0 %v2207
    %v2271 = vpop.xlane.xlu0 %2270
    %2272 = vadd.xlane.f32.xlu0 %v2209
    %v2273 = vpop.xlane.xlu0 %2272
    %2274 = vadd.xlane.f32.xlu0 %v2211
    %v2275 = vpop.xlane.xlu0 %2274
    %2276 = vadd.xlane.f32.xlu0 %v2213
    %v2277 = vpop.xlane.xlu0 %2276
    %2278 = vadd.xlane.f32.xlu0 %v2215
    %v2279 = vpop.xlane.xlu0 %2278
    %2280 = vadd.xlane.f32.xlu0 %v2217
    %v2281 = vpop.xlane.xlu0 %2280
    %2282 = vadd.xlane.f32.xlu0 %v2219
    %v2283 = vpop.xlane.xlu0 %2282
    %2284 = vadd.xlane.f32.xlu0 %v2221
    %v2285 = vpop.xlane.xlu0 %2284
    %2286 = vadd.xlane.f32.xlu0 %v2223
    %v2287 = vpop.xlane.xlu0 %2286
    %2288 = vadd.xlane.f32.xlu0 %v2225
    %v2289 = vpop.xlane.xlu0 %2288
    %2290 = vadd.xlane.f32.xlu0 %v2227
    %v2291 = vpop.xlane.xlu0 %2290
    %2292 = vadd.xlane.f32.xlu0 %v2229
    %v2293 = vpop.xlane.xlu0 %2292
    %2294 = vadd.xlane.f32.xlu0 %v2231
    %v2295 = vpop.xlane.xlu0 %2294
    %2296 = vadd.xlane.f32.xlu0 %v2233
    %v2297 = vpop.xlane.xlu0 %2296
    %2298 = vadd.xlane.f32.xlu0 %v2235
    %v2299 = vpop.xlane.xlu0 %2298
    %2300 = vadd.xlane.f32.xlu0 %v2237
    %v2301 = vpop.xlane.xlu0 %2300
    %2302 = vadd.xlane.f32.xlu0 %v2239
    %v2303 = vpop.xlane.xlu0 %2302
    %2304 = vadd.xlane.f32.xlu0 %v2241
    %v2305 = vpop.xlane.xlu0 %2304
    %2306 = vadd.xlane.f32.xlu0 %v2243
    %v2307 = vpop.xlane.xlu0 %2306
    %2308 = vadd.xlane.f32.xlu0 %v2245
    %v2309 = vpop.xlane.xlu0 %2308
    %v2310 = vadd.f32 %v2247, %v2249
    %v2311 = vadd.f32 %v2310, %v2251
    %v2312 = vadd.f32 %v2311, %v2253
    %v2313 = vadd.f32 %v2312, %v2255
    %v2314 = vadd.f32 %v2313, %v2257
    %v2315 = vadd.f32 %v2314, %v2259
    %v2316 = vadd.f32 %v2315, %v2261
    %v2317 = vadd.f32 %v2316, %v2263
    %v2318 = vadd.f32 %v2317, %v2265
    %v2319 = vadd.f32 %v2318, %v2267
    %v2320 = vadd.f32 %v2319, %v2269
    %v2321 = vadd.f32 %v2320, %v2271
    %v2322 = vadd.f32 %v2321, %v2273
    %v2323 = vadd.f32 %v2322, %v2275
    %v2324 = vadd.f32 %v2323, %v2277
    %v2325 = vrot.slane %v2324, 4
    %v2326 = vadd.f32 %v2324, %v2325
    %v2327 = vrot.slane %v2326, 2
    %v2328 = vadd.f32 %v2326, %v2327
    %v2329 = vrot.slane %v2328, 1
    %v2330 = vadd.f32 %v2328, %v2329
    %v2331 = vadd.f32 %v2279, %v2281
    %v2332 = vadd.f32 %v2331, %v2283
    %v2333 = vadd.f32 %v2332, %v2285
    %v2334 = vadd.f32 %v2333, %v2287
    %v2335 = vadd.f32 %v2334, %v2289
    %v2336 = vadd.f32 %v2335, %v2291
    %v2337 = vadd.f32 %v2336, %v2293
    %v2338 = vadd.f32 %v2337, %v2295
    %v2339 = vadd.f32 %v2338, %v2297
    %v2340 = vadd.f32 %v2339, %v2299
    %v2341 = vadd.f32 %v2340, %v2301
    %v2342 = vadd.f32 %v2341, %v2303
    %v2343 = vadd.f32 %v2342, %v2305
    %v2344 = vadd.f32 %v2343, %v2307
    %v2345 = vadd.f32 %v2344, %v2309
    %v2346 = vrot.slane %v2345, 4
    %v2347 = vadd.f32 %v2345, %v2346
    %v2348 = vrot.slane %v2347, 2
    %v2349 = vadd.f32 %v2347, %v2348
    %v2350 = vrot.slane %v2349, 1
    %v2351 = vadd.f32 %v2349, %v2350
    %v2352 = vsub.f32 0.0, %v2148
    %v2353 = vsub.f32 0.0, %v2149
    %v2354 = vmul.f32 %v2352, 1.442695
    %v2355 = vpow.pop %v2354
    %v2356 = vmul.f32 %v2353, 1.442695
    %v2357 = vpow.pop %v2356
    %v2358 = vadd.f32 %v2330, %v2355
    %v2359 = vadd.f32 %v2351, %v2357
    %v2360 = vlog2.pop %v2358
    %v2361 = vmul.f32 %v2360, 0.6931472
    %v2362 = vlog2.pop %v2359
    %v2363 = vmul.f32 %v2362, 0.6931472
    %v2364 = vadd.f32 %v2148, %v2361
    %v2365 = vadd.f32 %v2149, %v2363
    %v2366 = vadd.f32 %v1944, %v2364
    %v2367 = vadd.f32 %v1945, %v2365
    %2368 = vst [vmem:[#allocation11] sm:$0x1] %v2366
    %2369 = vst [vmem:[#allocation11 + $0x1] sm:$0x1] %v2367
    // Predicated region
    $region50: #{tpu_custom_call.1} parent=1 // pred_check
      _
    $region51: #{tpu_custom_call.1} parent=1 // pred_check_branch
      %2371 = sbr.rel (0) target = $region53
    $region52: #{tpu_custom_call.1} parent=1 // pred_region
      %s2373 = ssub.s32 4096, 4096
      %2374 = vsyncadd [#allocation4], %s2373
      %s2375 = sshll.u32 [#allocation10], 4
      %s2376 = int_to_ptr.vmem [resolvable:$true] %s2375
      %2381 = dma.vmem_to_hbm [thread:$0]  %s2376, 4096, %s8, [#allocation4], 128, 128, 8
    $region53: #{tpu_custom_call.1} parent=1 // pred_fallthru
      _
    // Predicated region
    $region54: #{tpu_custom_call.1} parent=1 // pred_check
      _
    $region55: #{tpu_custom_call.1} parent=1 // pred_check_branch
      %2383 = sbr.rel (0) target = $region57
    $region56: #{tpu_custom_call.1} parent=1 // pred_region
      %s2385 = ssub.s32 32, 32
      %2386 = vsyncadd [#allocation12], %s2385
      %s2387 = sshll.u32 [#allocation11], 4
      %s2388 = int_to_ptr.vmem [resolvable:$true] %s2387
      %2393 = dma.vmem_to_hbm [thread:$0]  %s2388, 32, %s9, [#allocation12], 16, 16, 1
    $region57: #{tpu_custom_call.1} parent=1 // pred_fallthru
      _
    // Predicated region
    $region58: #{tpu_custom_call.1} parent=1 // pred_check
      _
    $region59: #{tpu_custom_call.1} parent=1 // pred_check_branch
      %2395 = sbr.rel (0) target = $region61
    $region60: #{tpu_custom_call.1} parent=1 // pred_region
      %2396 = dma.done [#allocation4], 4096
    $region61: #{tpu_custom_call.1} parent=1 // pred_fallthru
      _
    // Predicated region
    $region62: #{tpu_custom_call.1} parent=1 // pred_check
      _
    $region63: #{tpu_custom_call.1} parent=1 // pred_check_branch
      %2398 = sbr.rel (0) target = $region65
    $region64: #{tpu_custom_call.1} parent=1 // pred_region
      %2399 = dma.done [#allocation12], 32
    $region65: #{tpu_custom_call.1} parent=1 // pred_fallthru
      _
    %2400 = vsyncpa [#allocation3], 1
    %2401 = vsyncpa [#allocation6], 1
    %2402 = vsyncpa [#allocation9], 1
    %2403 = vsyncpa [#allocation4], 1
    %2404 = vsyncpa [#allocation12], 1

</llo_original>
